<compile_context>
chip_gen: v6e
topology: v6e:2x2x1
jax: 0.10.0
libtpu: 0.0.40
codegen_flags: <defaults>
</compile_context>

<pallas_src>
import functools

import jax
import jax.numpy as jnp
from jax.experimental import pallas as pl
from jax.experimental.pallas import tpu as pltpu


# --------------------------------------------------------------------------
# Fused RCAB kernel: one grid step == B_blk images, batch folded into lanes.
# --------------------------------------------------------------------------
def _rcab_kernel(x_ref, w_ref, p_ref, o_ref, *, W, Cr):
    """x_ref/o_ref: (B, C, H*W); w_ref: (2, C, 9*C) bf16 (conv1, conv2);
    p_ref: (C, 3+3*Cr) f32 packed small params."""
    B, C, HW = x_ref.shape
    BHW = B * HW

    # Wide lane-dense slab: images concatenated along the lane axis (f32,
    # also reused as the residual).
    xw = jnp.concatenate([x_ref[b].astype(jnp.float32) for b in range(B)],
                         axis=1)                                   # (C, BHW)

    # Per-lane position predicates shared by both convs.  `rpos` is the flat
    # position within an image, `col` the column within a row.
    pos = jax.lax.broadcasted_iota(jnp.int32, (C, BHW), 1)
    rpos = pos % HW
    col = pos % W

    def tap_mask(dh, dw):
        m = None
        if dh == -1:
            m = rpos >= W
        elif dh == 1:
            m = rpos < HW - W
        c = None
        if dw == -1:
            c = col >= 1
        elif dw == 1:
            c = col < W - 1
        if c is not None:
            m = c if m is None else jnp.logical_and(m, c)
        return m

    def conv3x3(src, wm, bias, relu):
        # src: (C, BHW) f32 -> (C, BHW) f32.  Taps via in-register lane
        # rotations (XLU) + masks; no padded scratch, no memset.
        taps = []
        for dh in (-1, 0, 1):
            for dw in (-1, 0, 1):
                off = dh * W + dw
                t = src if off == 0 else pltpu.roll(src, (-off) % BHW, axis=1)
                t = t.astype(jnp.bfloat16)          # bf16 staging for the MXU
                m = tap_mask(dh, dw)
                if m is not None:
                    t = jnp.where(m, t, 0.0)
                taps.append(t)
        patch = jnp.concatenate(taps, axis=0)       # (9*C, BHW) bf16
        acc = jnp.dot(wm, patch, preferred_element_type=jnp.float32) + bias
        return jnp.maximum(acc, 0.0) if relu else acc

    # Unpack the small-parameter block.
    sp = p_ref[...]                                  # (C, 3 + 3*Cr) f32
    b1 = sp[:, 0:1]                                  # (C, 1)
    b2 = sp[:, 1:2]                                  # (C, 1)
    cab2 = sp[:, 2:3]                                # (C, 1)
    caw1t = sp[:, 3:3 + Cr]                          # (C, Cr) == W1^T
    caw2 = sp[:, 3 + Cr:3 + 2 * Cr]                  # (C, Cr) == W2
    cab1 = sp[0:1, 3 + 2 * Cr:3 + 3 * Cr]            # (1, Cr)

    y = conv3x3(xw, w_ref[0], b1, relu=True)         # Conv3x3 + ReLU
    y = conv3x3(y, w_ref[1], b2, relu=False)         # Conv3x3

    # Channel attention (SE) + RCAB residual, per image (aligned 128-lane
    # slices of the wide slab -> unmasked lane-dense stores).
    for b in range(B):
        lo = b * HW
        y_b = y[:, lo:lo + HW]
        x_b = xw[:, lo:lo + HW]
        pooled = jnp.mean(y_b, axis=1, keepdims=True)                  # (C,1)
        h = jnp.sum(caw1t * pooled, axis=0, keepdims=True) + cab1      # (1,Cr)
        h = jnp.maximum(h, 0.0)
        s = jnp.sum(caw2 * h, axis=1, keepdims=True) + cab2            # (C,1)
        s = jax.nn.sigmoid(s)
        o_ref[b] = (x_b + y_b * s).astype(o_ref.dtype)


# --------------------------------------------------------------------------
# Wrapper
# --------------------------------------------------------------------------
def _pick_batch_block(n, max_block=8):
    """Largest divisor of n (<= max_block) keeping >= 4 (else >= 2, else 1)
    grid steps, so the per-step overhead is amortised without starving the
    parallel grid axis that v7x's two TensorCores split."""
    divisors = [b for b in range(1, min(n, max_block) + 1) if n % b == 0]
    for min_steps in (4, 2, 1):
        cands = [b for b in divisors if n // b >= min_steps]
        if cands:
            return max(cands)
    return 1


def rcab_forward(x_nchw, params, *, batch_block=None):
    N, C, H, W = x_nchw.shape
    HW = H * W
    Cr = params["ca_w1"].shape[0]
    if batch_block is None:
        batch_block = _pick_batch_block(N)
    assert N % batch_block == 0
    grid_n = N // batch_block

    xf = x_nchw.reshape(N, C, HW)

    # Conv weights: (Cout, Cin, 3, 3) -> (Cout, kh, kw, Cin) -> (Cout, 9*Cin);
    # both convs stacked into one bf16 block.
    w1 = params["w1"].transpose(0, 2, 3, 1).reshape(C, 9 * C)
    w2 = params["w2"].transpose(0, 2, 3, 1).reshape(C, 9 * C)
    wpack = jnp.stack([w1, w2], axis=0).astype(jnp.bfloat16)   # (2, C, 9*C)

    # All small params packed into one (C, 3 + 3*Cr) f32 block:
    #   col 0: b1, col 1: b2, col 2: ca_b2,
    #   cols [3, 3+Cr): ca_w1^T, cols [3+Cr, 3+2Cr): ca_w2,
    #   cols [3+2Cr, 3+3Cr): row 0 holds ca_b1 (rest zero).
    P = 3 + 3 * Cr
    sp = jnp.zeros((C, P), jnp.float32)
    sp = sp.at[:, 0].set(params["b1"])
    sp = sp.at[:, 1].set(params["b2"])
    sp = sp.at[:, 2].set(params["ca_b2"])
    sp = sp.at[:, 3:3 + Cr].set(params["ca_w1"][:, :, 0, 0].T)
    sp = sp.at[:, 3 + Cr:3 + 2 * Cr].set(params["ca_w2"][:, :, 0, 0])
    sp = sp.at[0, 3 + 2 * Cr:3 + 3 * Cr].set(params["ca_b1"])

    out = pl.pallas_call(
        functools.partial(_rcab_kernel, W=W, Cr=Cr),
        out_shape=jax.ShapeDtypeStruct((N, C, HW), x_nchw.dtype),
        grid_spec=pltpu.PrefetchScalarGridSpec(
            num_scalar_prefetch=0,
            grid=(grid_n,),
            in_specs=[
                pl.BlockSpec((batch_block, C, HW), lambda g: (g, 0, 0)),  # x
                pl.BlockSpec((2, C, 9 * C), lambda g: (0, 0, 0)),  # conv wts
                pl.BlockSpec((C, P), lambda g: (0, 0)),            # small prm
            ],
            out_specs=pl.BlockSpec((batch_block, C, HW), lambda g: (g, 0, 0)),
        ),
        compiler_params=pltpu.CompilerParams(
            dimension_semantics=("parallel",)),   # v7x: 2 TCs split the grid
    )(xf, wpack, sp)
    return out.reshape(N, C, H, W)


# --------------------------------------------------------------------------
# Pure-JAX reference (matches the PyTorch RCAB forward, f32 everywhere)
# --------------------------------------------------------------------------
def _rcab_reference(x, p):
    dn = ("NCHW", "OIHW", "NCHW")
    z = jax.lax.conv_general_dilated(x, p["w1"], (1, 1), "SAME",
                                     dimension_numbers=dn)
    z = jnp.maximum(z + p["b1"][None, :, None, None], 0.0)
    z = jax.lax.conv_general_dilated(z, p["w2"], (1, 1), "SAME",
                                     dimension_numbers=dn)
    z = z + p["b2"][None, :, None, None]
    m = jnp.mean(z, axis=(2, 3))                                     # (N, C)
    h = jnp.maximum(m @ p["ca_w1"][:, :, 0, 0].T + p["ca_b1"], 0.0)  # (N, Cr)
    s = jax.nn.sigmoid(h @ p["ca_w2"][:, :, 0, 0].T + p["ca_b2"])    # (N, C)
    return x + z * s[:, :, None, None]


# --------------------------------------------------------------------------
# Deterministic parameter init (nn.Conv2d-shaped, synthetic values)
# --------------------------------------------------------------------------
def init_params(key, num_features, reduction):
    C, Cr = num_features, num_features // reduction
    ks = jax.random.split(key, 8)
    return {
        "w1": 0.1 * jax.random.normal(ks[0], (C, C, 3, 3), jnp.float32),
        "b1": 0.01 * jax.random.normal(ks[1], (C,), jnp.float32),
        "w2": 0.1 * jax.random.normal(ks[2], (C, C, 3, 3), jnp.float32),
        "b2": 0.01 * jax.random.normal(ks[3], (C,), jnp.float32),
        "ca_w1": 0.1 * jax.random.normal(ks[4], (Cr, C, 1, 1), jnp.float32),
        "ca_b1": 0.01 * jax.random.normal(ks[5], (Cr,), jnp.float32),
        "ca_w2": 0.1 * jax.random.normal(ks[6], (C, Cr, 1, 1), jnp.float32),
        "ca_b2": 0.01 * jax.random.normal(ks[7], (C,), jnp.float32),
    }


# --------------------------------------------------------------------------
if __name__ == "__main__":
    num_features, reduction = 8, 4
    N, H, W = 8, 16, 16            # N=8 -> batch_block=2, grid=(4,) steps

    key = jax.random.PRNGKey(0)
    key, kx = jax.random.split(key)
    x = jax.random.normal(kx, (N, num_features, H, W), jnp.float32)  # NCHW

    params = init_params(key, num_features, reduction)

    out = rcab_forward(x, params)
    jax.block_until_ready(out)

    ref = _rcab_reference(x, params)
    assert out.shape == x.shape and out.dtype == x.dtype
    # bf16 MXU operands with f32 accumulation -> loose tolerance vs f32 ref.
    assert jnp.allclose(out, ref, atol=5e-2, rtol=5e-2), \
        float(jnp.max(jnp.abs(out - ref)))
    print("KERNEL_OK")
</pallas_src>

<mosaic_0001>
module attributes {stable_mosaic.version = 11 : i64} {
  func.func @_rcab_kernel(%arg0: i32, %arg1: memref<2x8x256xf32, #tpu.memory_space<vmem>>, %arg2: memref<2x8x72xbf16, #tpu.memory_space<vmem>>, %arg3: memref<8x9xf32, #tpu.memory_space<vmem>>, %arg4: memref<2x8x256xf32, #tpu.memory_space<vmem>>) attributes {dimension_semantics = [#tpu.dimension_semantics<parallel>], iteration_bounds = array<i64: 4>, scalar_prefetch = 0 : i64, scratch_operands = 0 : i64, tpu.core_type = #tpu.core_type<tc>, window_params = [{transform_indices = @transform_0, window_bounds = array<i64: 2, 8, 256>}, {pipeline_mode = #tpu.pipeline_mode<synchronous>, transform_indices = @transform_1, window_bounds = array<i64: 2, 8, 72>}, {pipeline_mode = #tpu.pipeline_mode<synchronous>, transform_indices = @transform_2, window_bounds = array<i64: 8, 9>}, {transform_indices = @transform_3, window_bounds = array<i64: 2, 8, 256>}]} {
    %c0 = arith.constant 0 : index
    %c0_0 = arith.constant 0 : index
    %c0_1 = arith.constant 0 : index
    %0 = vector.load %arg1[%c0, %c0_0, %c0_1] : memref<2x8x256xf32, #tpu.memory_space<vmem>>, vector<1x8x256xf32>
    %1 = vector.shape_cast %0 : vector<1x8x256xf32> to vector<8x256xf32>
    %c1 = arith.constant 1 : index
    %c0_2 = arith.constant 0 : index
    %c0_3 = arith.constant 0 : index
    %2 = vector.load %arg1[%c1, %c0_2, %c0_3] : memref<2x8x256xf32, #tpu.memory_space<vmem>>, vector<1x8x256xf32>
    %3 = vector.shape_cast %2 : vector<1x8x256xf32> to vector<8x256xf32>
    %4 = tpu.concatenate %1, %3 in 1 : vector<8x256xf32>, vector<8x256xf32> -> vector<8x512xf32>
    %5 = tpu.iota {dimensions = array<i32: 1>} : vector<8x512xi32>
    %c256_i32 = arith.constant 256 : i32
    %c0_i32 = arith.constant 0 : i32
    %6 = arith.cmpi eq, %c256_i32, %c0_i32 : i32
    %c1_i32 = arith.constant 1 : i32
    %7 = arith.select %6, %c1_i32, %c256_i32 : i32
    %8 = vector.broadcast %7 : i32 to vector<8x512xi32>
    %9 = arith.remsi %5, %8 : vector<8x512xi32>
    %c0_i32_4 = arith.constant 0 : i32
    %10 = vector.broadcast %c0_i32_4 : i32 to vector<8x512xi32>
    %11 = arith.cmpi ne, %9, %10 : vector<8x512xi32>
    %c0_i32_5 = arith.constant 0 : i32
    %12 = vector.broadcast %c0_i32_5 : i32 to vector<8x512xi32>
    %13 = arith.cmpi slt, %9, %12 : vector<8x512xi32>
    %c0_i32_6 = arith.constant 0 : i32
    %14 = arith.cmpi slt, %7, %c0_i32_6 : i32
    %15 = vector.broadcast %14 : i1 to vector<8x512xi1>
    %16 = vector.broadcast %15 : vector<8x512xi1> to vector<8x512xi1>
    %17 = arith.xori %13, %16 : vector<8x512xi1>
    %18 = arith.andi %17, %11 : vector<8x512xi1>
    %19 = vector.broadcast %7 : i32 to vector<8x512xi32>
    %20 = arith.addi %9, %19 : vector<8x512xi32>
    %21 = arith.select %18, %20, %9 : vector<8x512xi1>, vector<8x512xi32>
    %c16_i32 = arith.constant 16 : i32
    %c0_i32_7 = arith.constant 0 : i32
    %22 = arith.cmpi eq, %c16_i32, %c0_i32_7 : i32
    %c1_i32_8 = arith.constant 1 : i32
    %23 = arith.select %22, %c1_i32_8, %c16_i32 : i32
    %24 = vector.broadcast %23 : i32 to vector<8x512xi32>
    %25 = arith.remsi %5, %24 : vector<8x512xi32>
    %c0_i32_9 = arith.constant 0 : i32
    %26 = vector.broadcast %c0_i32_9 : i32 to vector<8x512xi32>
    %27 = arith.cmpi ne, %25, %26 : vector<8x512xi32>
    %c0_i32_10 = arith.constant 0 : i32
    %28 = vector.broadcast %c0_i32_10 : i32 to vector<8x512xi32>
    %29 = arith.cmpi slt, %25, %28 : vector<8x512xi32>
    %c0_i32_11 = arith.constant 0 : i32
    %30 = arith.cmpi slt, %23, %c0_i32_11 : i32
    %31 = vector.broadcast %30 : i1 to vector<8x512xi1>
    %32 = vector.broadcast %31 : vector<8x512xi1> to vector<8x512xi1>
    %33 = arith.xori %29, %32 : vector<8x512xi1>
    %34 = arith.andi %33, %27 : vector<8x512xi1>
    %35 = vector.broadcast %23 : i32 to vector<8x512xi32>
    %36 = arith.addi %25, %35 : vector<8x512xi32>
    %37 = arith.select %34, %36, %25 : vector<8x512xi1>, vector<8x512xi32>
    %c0_12 = arith.constant 0 : index
    %c0_13 = arith.constant 0 : index
    %38 = vector.load %arg3[%c0_12, %c0_13] : memref<8x9xf32, #tpu.memory_space<vmem>>, vector<8x9xf32>
    %39 = vector.extract_strided_slice %38 {offsets = [0, 0], sizes = [8, 1], strides = [1, 1]} : vector<8x9xf32> to vector<8x1xf32>
    %40 = vector.extract_strided_slice %38 {offsets = [0, 1], sizes = [8, 1], strides = [1, 1]} : vector<8x9xf32> to vector<8x1xf32>
    %41 = vector.extract_strided_slice %38 {offsets = [0, 2], sizes = [8, 1], strides = [1, 1]} : vector<8x9xf32> to vector<8x1xf32>
    %42 = vector.extract_strided_slice %38 {offsets = [0, 3], sizes = [8, 2], strides = [1, 1]} : vector<8x9xf32> to vector<8x2xf32>
    %43 = vector.extract_strided_slice %38 {offsets = [0, 5], sizes = [8, 2], strides = [1, 1]} : vector<8x9xf32> to vector<8x2xf32>
    %44 = vector.extract_strided_slice %38 {offsets = [0, 7], sizes = [1, 2], strides = [1, 1]} : vector<8x9xf32> to vector<1x2xf32>
    %c0_14 = arith.constant 0 : index
    %c0_15 = arith.constant 0 : index
    %c0_16 = arith.constant 0 : index
    %45 = vector.load %arg2[%c0_14, %c0_15, %c0_16] : memref<2x8x72xbf16, #tpu.memory_space<vmem>>, vector<1x8x72xbf16>
    %46 = vector.shape_cast %45 : vector<1x8x72xbf16> to vector<8x72xbf16>
    %c17_i32 = arith.constant 17 : i32
    %47 = tpu.dynamic_rotate %4 by %c17_i32 dim 1 : vector<8x512xf32>, i32 -> vector<8x512xf32>
    %48 = arith.truncf %47 : vector<8x512xf32> to vector<8x512xbf16>
    %c16_i32_17 = arith.constant 16 : i32
    %49 = vector.broadcast %c16_i32_17 : i32 to vector<8x512xi32>
    %50 = arith.cmpi sge, %21, %49 : vector<8x512xi32>
    %c1_i32_18 = arith.constant 1 : i32
    %51 = vector.broadcast %c1_i32_18 : i32 to vector<8x512xi32>
    %52 = arith.cmpi sge, %37, %51 : vector<8x512xi32>
    %53 = arith.andi %50, %52 : vector<8x512xi1>
    %cst = arith.constant 0.000000e+00 : f32
    %54 = arith.truncf %cst : f32 to bf16
    %55 = vector.broadcast %54 : bf16 to vector<8x512xbf16>
    %56 = arith.select %53, %48, %55 : vector<8x512xi1>, vector<8x512xbf16>
    %c16_i32_19 = arith.constant 16 : i32
    %57 = tpu.dynamic_rotate %4 by %c16_i32_19 dim 1 : vector<8x512xf32>, i32 -> vector<8x512xf32>
    %58 = arith.truncf %57 : vector<8x512xf32> to vector<8x512xbf16>
    %c16_i32_20 = arith.constant 16 : i32
    %59 = vector.broadcast %c16_i32_20 : i32 to vector<8x512xi32>
    %60 = arith.cmpi sge, %21, %59 : vector<8x512xi32>
    %cst_21 = arith.constant 0.000000e+00 : f32
    %61 = arith.truncf %cst_21 : f32 to bf16
    %62 = vector.broadcast %61 : bf16 to vector<8x512xbf16>
    %63 = arith.select %60, %58, %62 : vector<8x512xi1>, vector<8x512xbf16>
    %c15_i32 = arith.constant 15 : i32
    %64 = tpu.dynamic_rotate %4 by %c15_i32 dim 1 : vector<8x512xf32>, i32 -> vector<8x512xf32>
    %65 = arith.truncf %64 : vector<8x512xf32> to vector<8x512xbf16>
    %c16_i32_22 = arith.constant 16 : i32
    %66 = vector.broadcast %c16_i32_22 : i32 to vector<8x512xi32>
    %67 = arith.cmpi sge, %21, %66 : vector<8x512xi32>
    %c15_i32_23 = arith.constant 15 : i32
    %68 = vector.broadcast %c15_i32_23 : i32 to vector<8x512xi32>
    %69 = arith.cmpi slt, %37, %68 : vector<8x512xi32>
    %70 = arith.andi %67, %69 : vector<8x512xi1>
    %cst_24 = arith.constant 0.000000e+00 : f32
    %71 = arith.truncf %cst_24 : f32 to bf16
    %72 = vector.broadcast %71 : bf16 to vector<8x512xbf16>
    %73 = arith.select %70, %65, %72 : vector<8x512xi1>, vector<8x512xbf16>
    %c1_i32_25 = arith.constant 1 : i32
    %74 = tpu.dynamic_rotate %4 by %c1_i32_25 dim 1 : vector<8x512xf32>, i32 -> vector<8x512xf32>
    %75 = arith.truncf %74 : vector<8x512xf32> to vector<8x512xbf16>
    %c1_i32_26 = arith.constant 1 : i32
    %76 = vector.broadcast %c1_i32_26 : i32 to vector<8x512xi32>
    %77 = arith.cmpi sge, %37, %76 : vector<8x512xi32>
    %cst_27 = arith.constant 0.000000e+00 : f32
    %78 = arith.truncf %cst_27 : f32 to bf16
    %79 = vector.broadcast %78 : bf16 to vector<8x512xbf16>
    %80 = arith.select %77, %75, %79 : vector<8x512xi1>, vector<8x512xbf16>
    %81 = arith.truncf %4 : vector<8x512xf32> to vector<8x512xbf16>
    %c511_i32 = arith.constant 511 : i32
    %82 = tpu.dynamic_rotate %4 by %c511_i32 dim 1 : vector<8x512xf32>, i32 -> vector<8x512xf32>
    %83 = arith.truncf %82 : vector<8x512xf32> to vector<8x512xbf16>
    %c15_i32_28 = arith.constant 15 : i32
    %84 = vector.broadcast %c15_i32_28 : i32 to vector<8x512xi32>
    %85 = arith.cmpi slt, %37, %84 : vector<8x512xi32>
    %cst_29 = arith.constant 0.000000e+00 : f32
    %86 = arith.truncf %cst_29 : f32 to bf16
    %87 = vector.broadcast %86 : bf16 to vector<8x512xbf16>
    %88 = arith.select %85, %83, %87 : vector<8x512xi1>, vector<8x512xbf16>
    %c497_i32 = arith.constant 497 : i32
    %89 = tpu.dynamic_rotate %4 by %c497_i32 dim 1 : vector<8x512xf32>, i32 -> vector<8x512xf32>
    %90 = arith.truncf %89 : vector<8x512xf32> to vector<8x512xbf16>
    %c240_i32 = arith.constant 240 : i32
    %91 = vector.broadcast %c240_i32 : i32 to vector<8x512xi32>
    %92 = arith.cmpi slt, %21, %91 : vector<8x512xi32>
    %c1_i32_30 = arith.constant 1 : i32
    %93 = vector.broadcast %c1_i32_30 : i32 to vector<8x512xi32>
    %94 = arith.cmpi sge, %37, %93 : vector<8x512xi32>
    %95 = arith.andi %92, %94 : vector<8x512xi1>
    %cst_31 = arith.constant 0.000000e+00 : f32
    %96 = arith.truncf %cst_31 : f32 to bf16
    %97 = vector.broadcast %96 : bf16 to vector<8x512xbf16>
    %98 = arith.select %95, %90, %97 : vector<8x512xi1>, vector<8x512xbf16>
    %c496_i32 = arith.constant 496 : i32
    %99 = tpu.dynamic_rotate %4 by %c496_i32 dim 1 : vector<8x512xf32>, i32 -> vector<8x512xf32>
    %100 = arith.truncf %99 : vector<8x512xf32> to vector<8x512xbf16>
    %c240_i32_32 = arith.constant 240 : i32
    %101 = vector.broadcast %c240_i32_32 : i32 to vector<8x512xi32>
    %102 = arith.cmpi slt, %21, %101 : vector<8x512xi32>
    %cst_33 = arith.constant 0.000000e+00 : f32
    %103 = arith.truncf %cst_33 : f32 to bf16
    %104 = vector.broadcast %103 : bf16 to vector<8x512xbf16>
    %105 = arith.select %102, %100, %104 : vector<8x512xi1>, vector<8x512xbf16>
    %c495_i32 = arith.constant 495 : i32
    %106 = tpu.dynamic_rotate %4 by %c495_i32 dim 1 : vector<8x512xf32>, i32 -> vector<8x512xf32>
    %107 = arith.truncf %106 : vector<8x512xf32> to vector<8x512xbf16>
    %c240_i32_34 = arith.constant 240 : i32
    %108 = vector.broadcast %c240_i32_34 : i32 to vector<8x512xi32>
    %109 = arith.cmpi slt, %21, %108 : vector<8x512xi32>
    %c15_i32_35 = arith.constant 15 : i32
    %110 = vector.broadcast %c15_i32_35 : i32 to vector<8x512xi32>
    %111 = arith.cmpi slt, %37, %110 : vector<8x512xi32>
    %112 = arith.andi %109, %111 : vector<8x512xi1>
    %cst_36 = arith.constant 0.000000e+00 : f32
    %113 = arith.truncf %cst_36 : f32 to bf16
    %114 = vector.broadcast %113 : bf16 to vector<8x512xbf16>
    %115 = arith.select %112, %107, %114 : vector<8x512xi1>, vector<8x512xbf16>
    %116 = tpu.concatenate %56, %63, %73, %80, %81, %88, %98, %105, %115 in 0 : vector<8x512xbf16>, vector<8x512xbf16>, vector<8x512xbf16>, vector<8x512xbf16>, vector<8x512xbf16>, vector<8x512xbf16>, vector<8x512xbf16>, vector<8x512xbf16>, vector<8x512xbf16> -> vector<72x512xbf16>
    %cst_37 = arith.constant dense<0.000000e+00> : vector<8x512xf32>
    %117 = tpu.matmul %46, %116, %cst_37 {dimension_numbers = #tpu.dot_dimension_numbers<[1], [0], [0], [1], [0, 0, 1, 1], [], []>} : vector<8x72xbf16>, vector<72x512xbf16>, vector<8x512xf32> -> vector<8x512xf32>
    %118 = vector.broadcast %39 : vector<8x1xf32> to vector<8x512xf32>
    %119 = arith.addf %117, %118 : vector<8x512xf32>
    %cst_38 = arith.constant 0.000000e+00 : f32
    %120 = vector.broadcast %cst_38 : f32 to vector<8x512xf32>
    %121 = arith.maximumf %119, %120 : vector<8x512xf32>
    %c1_39 = arith.constant 1 : index
    %c0_40 = arith.constant 0 : index
    %c0_41 = arith.constant 0 : index
    %122 = vector.load %arg2[%c1_39, %c0_40, %c0_41] : memref<2x8x72xbf16, #tpu.memory_space<vmem>>, vector<1x8x72xbf16>
    %123 = vector.shape_cast %122 : vector<1x8x72xbf16> to vector<8x72xbf16>
    %c17_i32_42 = arith.constant 17 : i32
    %124 = tpu.dynamic_rotate %121 by %c17_i32_42 dim 1 : vector<8x512xf32>, i32 -> vector<8x512xf32>
    %125 = arith.truncf %124 : vector<8x512xf32> to vector<8x512xbf16>
    %c16_i32_43 = arith.constant 16 : i32
    %126 = vector.broadcast %c16_i32_43 : i32 to vector<8x512xi32>
    %127 = arith.cmpi sge, %21, %126 : vector<8x512xi32>
    %c1_i32_44 = arith.constant 1 : i32
    %128 = vector.broadcast %c1_i32_44 : i32 to vector<8x512xi32>
    %129 = arith.cmpi sge, %37, %128 : vector<8x512xi32>
    %130 = arith.andi %127, %129 : vector<8x512xi1>
    %cst_45 = arith.constant 0.000000e+00 : f32
    %131 = arith.truncf %cst_45 : f32 to bf16
    %132 = vector.broadcast %131 : bf16 to vector<8x512xbf16>
    %133 = arith.select %130, %125, %132 : vector<8x512xi1>, vector<8x512xbf16>
    %c16_i32_46 = arith.constant 16 : i32
    %134 = tpu.dynamic_rotate %121 by %c16_i32_46 dim 1 : vector<8x512xf32>, i32 -> vector<8x512xf32>
    %135 = arith.truncf %134 : vector<8x512xf32> to vector<8x512xbf16>
    %c16_i32_47 = arith.constant 16 : i32
    %136 = vector.broadcast %c16_i32_47 : i32 to vector<8x512xi32>
    %137 = arith.cmpi sge, %21, %136 : vector<8x512xi32>
    %cst_48 = arith.constant 0.000000e+00 : f32
    %138 = arith.truncf %cst_48 : f32 to bf16
    %139 = vector.broadcast %138 : bf16 to vector<8x512xbf16>
    %140 = arith.select %137, %135, %139 : vector<8x512xi1>, vector<8x512xbf16>
    %c15_i32_49 = arith.constant 15 : i32
    %141 = tpu.dynamic_rotate %121 by %c15_i32_49 dim 1 : vector<8x512xf32>, i32 -> vector<8x512xf32>
    %142 = arith.truncf %141 : vector<8x512xf32> to vector<8x512xbf16>
    %c16_i32_50 = arith.constant 16 : i32
    %143 = vector.broadcast %c16_i32_50 : i32 to vector<8x512xi32>
    %144 = arith.cmpi sge, %21, %143 : vector<8x512xi32>
    %c15_i32_51 = arith.constant 15 : i32
    %145 = vector.broadcast %c15_i32_51 : i32 to vector<8x512xi32>
    %146 = arith.cmpi slt, %37, %145 : vector<8x512xi32>
    %147 = arith.andi %144, %146 : vector<8x512xi1>
    %cst_52 = arith.constant 0.000000e+00 : f32
    %148 = arith.truncf %cst_52 : f32 to bf16
    %149 = vector.broadcast %148 : bf16 to vector<8x512xbf16>
    %150 = arith.select %147, %142, %149 : vector<8x512xi1>, vector<8x512xbf16>
    %c1_i32_53 = arith.constant 1 : i32
    %151 = tpu.dynamic_rotate %121 by %c1_i32_53 dim 1 : vector<8x512xf32>, i32 -> vector<8x512xf32>
    %152 = arith.truncf %151 : vector<8x512xf32> to vector<8x512xbf16>
    %c1_i32_54 = arith.constant 1 : i32
    %153 = vector.broadcast %c1_i32_54 : i32 to vector<8x512xi32>
    %154 = arith.cmpi sge, %37, %153 : vector<8x512xi32>
    %cst_55 = arith.constant 0.000000e+00 : f32
    %155 = arith.truncf %cst_55 : f32 to bf16
    %156 = vector.broadcast %155 : bf16 to vector<8x512xbf16>
    %157 = arith.select %154, %152, %156 : vector<8x512xi1>, vector<8x512xbf16>
    %158 = arith.truncf %121 : vector<8x512xf32> to vector<8x512xbf16>
    %c511_i32_56 = arith.constant 511 : i32
    %159 = tpu.dynamic_rotate %121 by %c511_i32_56 dim 1 : vector<8x512xf32>, i32 -> vector<8x512xf32>
    %160 = arith.truncf %159 : vector<8x512xf32> to vector<8x512xbf16>
    %c15_i32_57 = arith.constant 15 : i32
    %161 = vector.broadcast %c15_i32_57 : i32 to vector<8x512xi32>
    %162 = arith.cmpi slt, %37, %161 : vector<8x512xi32>
    %cst_58 = arith.constant 0.000000e+00 : f32
    %163 = arith.truncf %cst_58 : f32 to bf16
    %164 = vector.broadcast %163 : bf16 to vector<8x512xbf16>
    %165 = arith.select %162, %160, %164 : vector<8x512xi1>, vector<8x512xbf16>
    %c497_i32_59 = arith.constant 497 : i32
    %166 = tpu.dynamic_rotate %121 by %c497_i32_59 dim 1 : vector<8x512xf32>, i32 -> vector<8x512xf32>
    %167 = arith.truncf %166 : vector<8x512xf32> to vector<8x512xbf16>
    %c240_i32_60 = arith.constant 240 : i32
    %168 = vector.broadcast %c240_i32_60 : i32 to vector<8x512xi32>
    %169 = arith.cmpi slt, %21, %168 : vector<8x512xi32>
    %c1_i32_61 = arith.constant 1 : i32
    %170 = vector.broadcast %c1_i32_61 : i32 to vector<8x512xi32>
    %171 = arith.cmpi sge, %37, %170 : vector<8x512xi32>
    %172 = arith.andi %169, %171 : vector<8x512xi1>
    %cst_62 = arith.constant 0.000000e+00 : f32
    %173 = arith.truncf %cst_62 : f32 to bf16
    %174 = vector.broadcast %173 : bf16 to vector<8x512xbf16>
    %175 = arith.select %172, %167, %174 : vector<8x512xi1>, vector<8x512xbf16>
    %c496_i32_63 = arith.constant 496 : i32
    %176 = tpu.dynamic_rotate %121 by %c496_i32_63 dim 1 : vector<8x512xf32>, i32 -> vector<8x512xf32>
    %177 = arith.truncf %176 : vector<8x512xf32> to vector<8x512xbf16>
    %c240_i32_64 = arith.constant 240 : i32
    %178 = vector.broadcast %c240_i32_64 : i32 to vector<8x512xi32>
    %179 = arith.cmpi slt, %21, %178 : vector<8x512xi32>
    %cst_65 = arith.constant 0.000000e+00 : f32
    %180 = arith.truncf %cst_65 : f32 to bf16
    %181 = vector.broadcast %180 : bf16 to vector<8x512xbf16>
    %182 = arith.select %179, %177, %181 : vector<8x512xi1>, vector<8x512xbf16>
    %c495_i32_66 = arith.constant 495 : i32
    %183 = tpu.dynamic_rotate %121 by %c495_i32_66 dim 1 : vector<8x512xf32>, i32 -> vector<8x512xf32>
    %184 = arith.truncf %183 : vector<8x512xf32> to vector<8x512xbf16>
    %c240_i32_67 = arith.constant 240 : i32
    %185 = vector.broadcast %c240_i32_67 : i32 to vector<8x512xi32>
    %186 = arith.cmpi slt, %21, %185 : vector<8x512xi32>
    %c15_i32_68 = arith.constant 15 : i32
    %187 = vector.broadcast %c15_i32_68 : i32 to vector<8x512xi32>
    %188 = arith.cmpi slt, %37, %187 : vector<8x512xi32>
    %189 = arith.andi %186, %188 : vector<8x512xi1>
    %cst_69 = arith.constant 0.000000e+00 : f32
    %190 = arith.truncf %cst_69 : f32 to bf16
    %191 = vector.broadcast %190 : bf16 to vector<8x512xbf16>
    %192 = arith.select %189, %184, %191 : vector<8x512xi1>, vector<8x512xbf16>
    %193 = tpu.concatenate %133, %140, %150, %157, %158, %165, %175, %182, %192 in 0 : vector<8x512xbf16>, vector<8x512xbf16>, vector<8x512xbf16>, vector<8x512xbf16>, vector<8x512xbf16>, vector<8x512xbf16>, vector<8x512xbf16>, vector<8x512xbf16>, vector<8x512xbf16> -> vector<72x512xbf16>
    %cst_70 = arith.constant dense<0.000000e+00> : vector<8x512xf32>
    %194 = tpu.matmul %123, %193, %cst_70 {dimension_numbers = #tpu.dot_dimension_numbers<[1], [0], [0], [1], [0, 0, 1, 1], [], []>} : vector<8x72xbf16>, vector<72x512xbf16>, vector<8x512xf32> -> vector<8x512xf32>
    %195 = vector.broadcast %40 : vector<8x1xf32> to vector<8x512xf32>
    %196 = arith.addf %194, %195 : vector<8x512xf32>
    %197 = vector.extract_strided_slice %196 {offsets = [0, 0], sizes = [8, 256], strides = [1, 1]} : vector<8x512xf32> to vector<8x256xf32>
    %198 = vector.extract_strided_slice %4 {offsets = [0, 0], sizes = [8, 256], strides = [1, 1]} : vector<8x512xf32> to vector<8x256xf32>
    %cst_71 = arith.constant dense<0.000000e+00> : vector<8xf32>
    %199 = vector.multi_reduction <add>, %197, %cst_71 [1] : vector<8x256xf32> to vector<8xf32>
    %200 = vector.shape_cast %199 : vector<8xf32> to vector<8x1xf32>
    %cst_72 = arith.constant 2.560000e+02 : f32
    %201 = vector.broadcast %cst_72 : f32 to vector<8x1xf32>
    %202 = arith.divf %200, %201 : vector<8x1xf32>
    %203 = vector.broadcast %202 : vector<8x1xf32> to vector<8x2xf32>
    %204 = arith.mulf %42, %203 : vector<8x2xf32>
    %cst_73 = arith.constant dense<0.000000e+00> : vector<2xf32>
    %205 = vector.multi_reduction <add>, %204, %cst_73 [0] : vector<8x2xf32> to vector<2xf32>
    %206 = vector.shape_cast %205 : vector<2xf32> to vector<1x2xf32>
    %207 = arith.addf %206, %44 : vector<1x2xf32>
    %cst_74 = arith.constant 0.000000e+00 : f32
    %208 = vector.broadcast %cst_74 : f32 to vector<1x2xf32>
    %209 = arith.maximumf %207, %208 : vector<1x2xf32>
    %210 = vector.broadcast %209 : vector<1x2xf32> to vector<8x2xf32>
    %211 = arith.mulf %43, %210 : vector<8x2xf32>
    %cst_75 = arith.constant dense<0.000000e+00> : vector<8xf32>
    %212 = vector.multi_reduction <add>, %211, %cst_75 [1] : vector<8x2xf32> to vector<8xf32>
    %213 = vector.shape_cast %212 : vector<8xf32> to vector<8x1xf32>
    %214 = arith.addf %213, %41 : vector<8x1xf32>
    %215 = arith.negf %214 : vector<8x1xf32>
    %216 = math.exp %215 : vector<8x1xf32>
    %cst_76 = arith.constant 1.000000e+00 : f32
    %217 = vector.broadcast %cst_76 : f32 to vector<8x1xf32>
    %218 = arith.addf %217, %216 : vector<8x1xf32>
    %219 = arith.divf %217, %218 : vector<8x1xf32>
    %220 = vector.broadcast %219 : vector<8x1xf32> to vector<8x256xf32>
    %221 = arith.mulf %197, %220 : vector<8x256xf32>
    %222 = arith.addf %198, %221 : vector<8x256xf32>
    %c0_77 = arith.constant 0 : index
    %c0_78 = arith.constant 0 : index
    %c0_79 = arith.constant 0 : index
    %223 = vector.load %arg4[%c0_77, %c0_78, %c0_79] : memref<2x8x256xf32, #tpu.memory_space<vmem>>, vector<1x8x256xf32>
    %224 = vector.shape_cast %223 : vector<1x8x256xf32> to vector<8x256xf32>
    %225 = vector.shape_cast %222 : vector<8x256xf32> to vector<1x8x256xf32>
    tpu.vector_store %arg4[%c0_77, %c0_78, %c0_79], %225 {strides = array<i32>} : memref<2x8x256xf32, #tpu.memory_space<vmem>>, vector<1x8x256xf32>,
    %226 = vector.extract_strided_slice %196 {offsets = [0, 256], sizes = [8, 256], strides = [1, 1]} : vector<8x512xf32> to vector<8x256xf32>
    %227 = vector.extract_strided_slice %4 {offsets = [0, 256], sizes = [8, 256], strides = [1, 1]} : vector<8x512xf32> to vector<8x256xf32>
    %cst_80 = arith.constant dense<0.000000e+00> : vector<8xf32>
    %228 = vector.multi_reduction <add>, %226, %cst_80 [1] : vector<8x256xf32> to vector<8xf32>
    %229 = vector.shape_cast %228 : vector<8xf32> to vector<8x1xf32>
    %cst_81 = arith.constant 2.560000e+02 : f32
    %230 = vector.broadcast %cst_81 : f32 to vector<8x1xf32>
    %231 = arith.divf %229, %230 : vector<8x1xf32>
    %232 = vector.broadcast %231 : vector<8x1xf32> to vector<8x2xf32>
    %233 = arith.mulf %42, %232 : vector<8x2xf32>
    %cst_82 = arith.constant dense<0.000000e+00> : vector<2xf32>
    %234 = vector.multi_reduction <add>, %233, %cst_82 [0] : vector<8x2xf32> to vector<2xf32>
    %235 = vector.shape_cast %234 : vector<2xf32> to vector<1x2xf32>
    %236 = arith.addf %235, %44 : vector<1x2xf32>
    %cst_83 = arith.constant 0.000000e+00 : f32
    %237 = vector.broadcast %cst_83 : f32 to vector<1x2xf32>
    %238 = arith.maximumf %236, %237 : vector<1x2xf32>
    %239 = vector.broadcast %238 : vector<1x2xf32> to vector<8x2xf32>
    %240 = arith.mulf %43, %239 : vector<8x2xf32>
    %cst_84 = arith.constant dense<0.000000e+00> : vector<8xf32>
    %241 = vector.multi_reduction <add>, %240, %cst_84 [1] : vector<8x2xf32> to vector<8xf32>
    %242 = vector.shape_cast %241 : vector<8xf32> to vector<8x1xf32>
    %243 = arith.addf %242, %41 : vector<8x1xf32>
    %244 = arith.negf %243 : vector<8x1xf32>
    %245 = math.exp %244 : vector<8x1xf32>
    %cst_85 = arith.constant 1.000000e+00 : f32
    %246 = vector.broadcast %cst_85 : f32 to vector<8x1xf32>
    %247 = arith.addf %246, %245 : vector<8x1xf32>
    %248 = arith.divf %246, %247 : vector<8x1xf32>
    %249 = vector.broadcast %248 : vector<8x1xf32> to vector<8x256xf32>
    %250 = arith.mulf %226, %249 : vector<8x256xf32>
    %251 = arith.addf %227, %250 : vector<8x256xf32>
    %c1_86 = arith.constant 1 : index
    %c0_87 = arith.constant 0 : index
    %c0_88 = arith.constant 0 : index
    %252 = vector.load %arg4[%c1_86, %c0_87, %c0_88] : memref<2x8x256xf32, #tpu.memory_space<vmem>>, vector<1x8x256xf32>
    %253 = vector.shape_cast %252 : vector<1x8x256xf32> to vector<8x256xf32>
    %254 = vector.shape_cast %251 : vector<8x256xf32> to vector<1x8x256xf32>
    tpu.vector_store %arg4[%c1_86, %c0_87, %c0_88], %254 {strides = array<i32>} : memref<2x8x256xf32, #tpu.memory_space<vmem>>, vector<1x8x256xf32>,
    return
  }
  func.func @transform_0(%arg0: i32) -> (i32, i32, i32) {
    %c0_i32 = arith.constant 0 : i32
    %c0_i32_0 = arith.constant 0 : i32
    %c0_i32_1 = arith.constant 0 : i32
    return %arg0, %c0_i32, %c0_i32_0 : i32, i32, i32
  }
  func.func @transform_1(%arg0: i32) -> (i32, i32, i32) {
    %c0_i32 = arith.constant 0 : i32
    %c0_i32_0 = arith.constant 0 : i32
    %c0_i32_1 = arith.constant 0 : i32
    %c0_i32_2 = arith.constant 0 : i32
    return %c0_i32, %c0_i32_0, %c0_i32_1 : i32, i32, i32
  }
  func.func @transform_2(%arg0: i32) -> (i32, i32) {
    %c0_i32 = arith.constant 0 : i32
    %c0_i32_0 = arith.constant 0 : i32
    %c0_i32_1 = arith.constant 0 : i32
    return %c0_i32, %c0_i32_0 : i32, i32
  }
  func.func @transform_3(%arg0: i32) -> (i32, i32, i32) {
    %c0_i32 = arith.constant 0 : i32
    %c0_i32_0 = arith.constant 0 : i32
    %c0_i32_1 = arith.constant 0 : i32
    return %arg0, %c0_i32, %c0_i32_0 : i32, i32, i32
  }
}

</mosaic_0001>

<llo_original>
// kernel: tpu_custom_call.1
$region0: #{tpu_custom_call.1}
  #allocation0 [shape = 'u32[]', space=smem, size = 0x4, offset = 0x4, fixed_abs, tag = 'smem constant byte address 0x4 - core index']
  #allocation1 [shape = 'u32[144,128]{1,0:T(1,128)}', space=vmem, size = 0x12000, scoped, tag = 'internal scratch']
  %s0 = inlined_call_operand.hbm [shape: f32[8,8,256], index: 0, kind: input, shape index: {}]
  %s1 = inlined_call_operand.hbm [shape: bf16[2,8,72], index: 1, kind: input, shape index: {}]
  %s2 = inlined_call_operand.hbm [shape: f32[8,9], index: 2, kind: input, shape index: {}]
  %s3 = inlined_call_operand.hbm [shape: f32[8,8,256], index: 3, kind: output, shape index: {}]
  %s4 = sld [smem:[#allocation0]]
  $region57: #{tpu_custom_call.1} parent=0
    _
  %s6 = ssub.s32 1, %s4
  %s7 = scalar_select 0, %s6, %s4
  $region1: #{tpu_custom_call.1} parent=0
    #allocation2 [shape = 'u8[32768]{0}', space=vmem, size = 0x8000, scoped, tag = 'input window, operand 0']
    #allocation3 [shape = 's32[2]{0}', space=sflag, size = 0x8, scoped, tag = 'scoped memory for tpu_custom_call.1']
    #allocation4 [shape = 's32[2]{0}', space=sflag, size = 0x8, scoped, tag = 'scoped memory for tpu_custom_call.1']
    #allocation5 [shape = 'u8[4096]{0}', space=vmem, size = 0x1000, scoped, tag = 'input window, operand 1, single buffered']
    #allocation6 [shape = 's32[1]{0}', space=sflag, size = 0x4, scoped, tag = 'scoped memory for tpu_custom_call.1']
    #allocation7 [shape = 'u8[4096]{0}', space=vmem, size = 0x1000, scoped, tag = 'input window, operand 2, single buffered']
    #allocation8 [shape = 'u8[32768]{0}', space=vmem, size = 0x8000, scoped, tag = 'output window, operand 0']
    %8 = vsyncpa [#allocation3], 0
    %s9 = scalar_lea.sflag [#allocation3], 1
    %10 = vsyncpa %s9, 0
    %11 = vsyncpa [#allocation6], 0
    %12 = vsyncpa [#allocation4], 0
    %s13 = scalar_lea.sflag [#allocation4], 1
    %14 = vsyncpa %s13, 0
    loop: start=0, step=1, limit=6
    $region2: #{tpu_custom_call.1} parent=1 // loop_pre_header
      _
    $region3: #{tpu_custom_call.1} parent=1 // loop_header
      %s16 = sphi 0, %s20
      %p17 = scmp.ge.s32.totalorder %s16, 6
      %s26 = sphi 0, %s28
      %s29 = sphi 0, %s26
      %s30 = sphi 0, %s29
      %s46 = sphi 0, %s30
      %s50 = sphi 0, %s50
      %s52 = sphi 0, %s50
      %s53 = sphi 0, %s52
      %s67 = sphi 0, %s53
      %s71 = sphi 0, %s71
      %s73 = sphi 0, %s71
      %s74 = sphi 0, %s73
      %s88 = sphi 0, %s74
      %s94 = sphi 0, %s96
      %s97 = sphi 0, %s94
      %s98 = sphi 0, %s97
      %s114 = sphi 0, %s98
    $region4: #{tpu_custom_call.1} parent=1 // loop_header_branch
      %19 = sbr.rel (%p17) target = $region8
    $region5: #{tpu_custom_call.1} parent=1 // loop_body
      %s21 = ssub.s32 %s16, 1
      %s22 = ssub.s32 %s16, 2
      %s23 = sadd.s32 %s16, 1
      %s24 = ssub.s32 %s16, %s23
      %p25 = scmp.eq.s32.totalorder %s24, 0
      %s27 = sadd.s32 %s26, 1
      %s28 = scalar_select %p25, %s26, %s27
      %p31 = pneg %p25
      %p32 = scmp.eq.s32.totalorder %s16, 3
      %p33 = por %p31, %p32
      %p34 = scmp.ne.s32.totalorder %s26, %s29
      %p35 = scmp.eq.s32.totalorder %s16, 0
      %p36 = por %p34, %p35
      %p37 = scmp.ne.s32.totalorder %s26, %s29
      %p38 = scmp.eq.s32.totalorder %s21, 3
      %p39 = por %p37, %p38
      %p40 = scmp.ne.s32.totalorder %s29, %s30
      %p41 = scmp.eq.s32.totalorder %s21, 0
      %p42 = por %p40, %p41
      %p43 = scmp.ne.s32.totalorder %s29, %s30
      %p44 = scmp.eq.s32.totalorder %s22, 3
      %p45 = por %p43, %p44
      %p47 = scmp.ne.s32.totalorder %s30, %s46
      %p48 = scmp.eq.s32.totalorder %s22, 0
      %p49 = por %p47, %p48
      %s51 = sadd.s32 %s50, 1
      %p54 = scmp.eq.s32.totalorder %s16, 3
      %p55 = scmp.ne.s32.totalorder %s50, %s52
      %p56 = scmp.eq.s32.totalorder %s16, 0
      %p57 = por %p55, %p56
      %p58 = scmp.ne.s32.totalorder %s50, %s52
      %p59 = scmp.eq.s32.totalorder %s21, 3
      %p60 = por %p58, %p59
      %p61 = scmp.ne.s32.totalorder %s52, %s53
      %p62 = scmp.eq.s32.totalorder %s21, 0
      %p63 = por %p61, %p62
      %p64 = scmp.ne.s32.totalorder %s52, %s53
      %p65 = scmp.eq.s32.totalorder %s22, 3
      %p66 = por %p64, %p65
      %p68 = scmp.ne.s32.totalorder %s53, %s67
      %p69 = scmp.eq.s32.totalorder %s22, 0
      %p70 = por %p68, %p69
      %s72 = sadd.s32 %s71, 1
      %p75 = scmp.eq.s32.totalorder %s16, 3
      %p76 = scmp.ne.s32.totalorder %s71, %s73
      %p77 = scmp.eq.s32.totalorder %s16, 0
      %p78 = por %p76, %p77
      %p79 = scmp.ne.s32.totalorder %s71, %s73
      %p80 = scmp.eq.s32.totalorder %s21, 3
      %p81 = por %p79, %p80
      %p82 = scmp.ne.s32.totalorder %s73, %s74
      %p83 = scmp.eq.s32.totalorder %s21, 0
      %p84 = por %p82, %p83
      %p85 = scmp.ne.s32.totalorder %s73, %s74
      %p86 = scmp.eq.s32.totalorder %s22, 3
      %p87 = por %p85, %p86
      %p89 = scmp.ne.s32.totalorder %s74, %s88
      %p90 = scmp.eq.s32.totalorder %s22, 0
      %p91 = por %p89, %p90
      %s92 = ssub.s32 %s16, %s23
      %p93 = scmp.eq.s32.totalorder %s92, 0
      %s95 = sadd.s32 %s94, 1
      %s96 = scalar_select %p93, %s94, %s95
      %p99 = pneg %p93
      %p100 = scmp.eq.s32.totalorder %s16, 3
      %p101 = por %p99, %p100
      %p102 = scmp.ne.s32.totalorder %s94, %s97
      %p103 = scmp.eq.s32.totalorder %s16, 0
      %p104 = por %p102, %p103
      %p105 = scmp.ne.s32.totalorder %s94, %s97
      %p106 = scmp.eq.s32.totalorder %s21, 3
      %p107 = por %p105, %p106
      %p108 = scmp.ne.s32.totalorder %s97, %s98
      %p109 = scmp.eq.s32.totalorder %s21, 0
      %p110 = por %p108, %p109
      %p111 = scmp.ne.s32.totalorder %s97, %s98
      %p112 = scmp.eq.s32.totalorder %s22, 3
      %p113 = por %p111, %p112
      %p115 = scmp.ne.s32.totalorder %s98, %s114
      %p116 = scmp.eq.s32.totalorder %s22, 0
      %p117 = por %p115, %p116
      %p118 = scmp.le.s32.totalorder 1, %s16
      %p119 = scmp.lt.s32.totalorder %s16, 5
      %p120 = pnand %p118, %p119
      %p121 = pneg %p120
      // Predicated region
      $region9: #{tpu_custom_call.1} parent=5 // pred_check
        _
      $region10: #{tpu_custom_call.1} parent=5 // pred_check_branch
        %123 = sbr.rel (%p120) target = $region12
      $region11: #{tpu_custom_call.1} parent=5 // pred_region
        %s124 = ssub.s32 %s16, 1
        // Predicated region
        $region13: #{tpu_custom_call.1} parent=11 // pred_check
          %p125 = pneg %p63
        $region14: #{tpu_custom_call.1} parent=11 // pred_check_branch
          %127 = sbr.rel (%p125) target = $region16
        $region15: #{tpu_custom_call.1} parent=11 // pred_region
          %s129 = ssub.s32 128, 128
          %130 = vsyncadd [#allocation6], %s129
          %s131 = sshll.u32 [#allocation5], 4
          %s132 = int_to_ptr.vmem [resolvable:$true] %s131
          %137 = dma.hbm_to_vmem [thread:$0]  %s1, 128, %s132, [#allocation6], 64, 64, 4
        $region16: #{tpu_custom_call.1} parent=11 // pred_fallthru
          _
        // Predicated region
        $region17: #{tpu_custom_call.1} parent=11 // pred_check
          %p138 = pneg %p84
        $region18: #{tpu_custom_call.1} parent=11 // pred_check_branch
          %140 = sbr.rel (%p138) target = $region20
        $region19: #{tpu_custom_call.1} parent=11 // pred_region
          %s142 = ssub.s32 128, 128
          %143 = vsyncadd [#allocation6], %s142
          %s145 = sshll.u32 [#allocation7], 4
          %s146 = int_to_ptr.vmem [resolvable:$true] %s145
          %148 = dma.hbm_to_vmem [thread:$0]  %s2, 128, %s146, [#allocation6]
        $region20: #{tpu_custom_call.1} parent=11 // pred_fallthru
          _
      $region12: #{tpu_custom_call.1} parent=5 // pred_fallthru
        _
      %p149 = scmp.lt.s32.totalorder %s16, 4
      // Predicated region
      $region21: #{tpu_custom_call.1} parent=5 // pred_check
        %p150 = pneg %p149
      $region22: #{tpu_custom_call.1} parent=5 // pred_check_branch
        %152 = sbr.rel (%p150) target = $region24
      $region23: #{tpu_custom_call.1} parent=5 // pred_region
        // Predicated region
        $region25: #{tpu_custom_call.1} parent=23 // pred_check
          %p153 = pneg %p36
        $region26: #{tpu_custom_call.1} parent=23 // pred_check_branch
          %155 = sbr.rel (%p153) target = $region28
        $region27: #{tpu_custom_call.1} parent=23 // pred_region
          %s156 = sand.u32 %s26, 1
          %s157 = scalar_lea.sflag [#allocation3], %s156
          %s158 = sand.u32 %s26, 1
          %s159 = smul.addr %s158, 32
          %s160 = scalar_lea.vmem [#allocation2], %s159
          %s161 = smul.u32 2, %s16
          %s163 = ssub.s32 512, 512
          %164 = vsyncadd %s157, %s163
          %s165 = smul.addr %s161, 2
          %s166 = smul.addr %s165, 128
          %s167 = scalar_lea.hbm %s0, %s166
          %s168 = sshll.u32 %s160, 4
          %s169 = int_to_ptr.vmem [resolvable:$true] %s168
          %174 = dma.hbm_to_vmem [thread:$0]  %s167, 512, %s169, %s157, 256, 256, 16
        $region28: #{tpu_custom_call.1} parent=23 // pred_fallthru
          _
      $region24: #{tpu_custom_call.1} parent=5 // pred_fallthru
        _
      %p175 = scmp.le.s32.totalorder 1, %s16
      %p176 = scmp.lt.s32.totalorder %s16, 5
      %p177 = pnand %p175, %p176
      %p178 = pneg %p177
      // Predicated region
      $region29: #{tpu_custom_call.1} parent=5 // pred_check
        _
      $region30: #{tpu_custom_call.1} parent=5 // pred_check_branch
        %180 = sbr.rel (%p177) target = $region32
      $region31: #{tpu_custom_call.1} parent=5 // pred_region
        %s181 = ssub.s32 %s16, 1
        %s182 = sand.u32 %s29, 1
        %s183 = scalar_lea.sflag [#allocation3], %s182
        %s184 = sand.u32 %s29, 1
        %s185 = smul.addr %s184, 32
        %s186 = scalar_lea.vmem [#allocation2], %s185
        // Predicated region
        $region33: #{tpu_custom_call.1} parent=31 // pred_check
          %p187 = pneg %p42
        $region34: #{tpu_custom_call.1} parent=31 // pred_check_branch
          %189 = sbr.rel (%p187) target = $region36
        $region35: #{tpu_custom_call.1} parent=31 // pred_region
          %190 = dma.done %s183, 512
        $region36: #{tpu_custom_call.1} parent=31 // pred_fallthru
          _
        // Predicated region
        $region37: #{tpu_custom_call.1} parent=31 // pred_check
          %p191 = pneg %p63
        $region38: #{tpu_custom_call.1} parent=31 // pred_check_branch
          %193 = sbr.rel (%p191) target = $region40
        $region39: #{tpu_custom_call.1} parent=31 // pred_region
          %194 = dma.done [#allocation6], 128
        $region40: #{tpu_custom_call.1} parent=31 // pred_fallthru
          _
        // Predicated region
        $region41: #{tpu_custom_call.1} parent=31 // pred_check
          %p195 = pneg %p84
        $region42: #{tpu_custom_call.1} parent=31 // pred_check_branch
          %197 = sbr.rel (%p195) target = $region44
        $region43: #{tpu_custom_call.1} parent=31 // pred_region
          %198 = dma.done [#allocation6], 128
        $region44: #{tpu_custom_call.1} parent=31 // pred_fallthru
          _
        %s199 = sand.u32 %s29, 1
        %s200 = scalar_lea.sflag [#allocation3], %s199
        %s201 = sand.u32 %s29, 1
        %s202 = smul.addr %s201, 32
        %s203 = scalar_lea.vmem [#allocation2], %s202
        %p204 = pneg %p42
        %p205 = pneg %p39
        %p206 = pneg %p63
        %p207 = pneg %p60
        %p208 = pneg %p84
        %p209 = pneg %p81
        %p210 = pneg %p110
        %p211 = pneg %p107
        %s212 = sand.u32 %s97, 1
        %s213 = scalar_lea.sflag [#allocation4], %s212
        %s214 = sand.u32 %s97, 1
        %s215 = smul.addr %s214, 32
        %s216 = scalar_lea.vmem [#allocation8], %s215
        %s217 = smul.u32 2, %s21
        %s218 = smul.u32 2, %s21
        %v222 = vld [vmem:[%s186] sm:$0xff]
        %v223 = vld [vmem:[%s186 + $0x8] sm:$0xff]
        %s224 = scalar_lea.vmem %s186, 16 [#allocation2]
        %v225 = vld [vmem:[%s224] sm:$0xff]
        %v226 = vld [vmem:[%s224 + $0x8] sm:$0xff]
        %v227 = vlaneseq
        %v228 = vand.u32 %v227, 127
        %v229 = vadd.s32 %v228, 128
        %v230 = vadd.s32 %v228, 256
        %v231 = vadd.s32 %v228, 384
        %vm232 = vcmp.lt.s32.totalorder %v228, 0
        %v233 = vsub.s32 0, %v228
        %v234 = vsel %vm232, %v233, %v228
        %v235 = vshrl.u32 %v234, 8
        %v236 = vand.u32 %v234, 255
        %v237 = vsub.s32 0, %v236
        %v238 = vsel %vm232, %v237, %v236
        %vm239 = vcmp.lt.s32.totalorder %v229, 0
        %v240 = vsub.s32 0, %v229
        %v241 = vsel %vm239, %v240, %v229
        %v242 = vshrl.u32 %v241, 8
        %v243 = vand.u32 %v241, 255
        %v244 = vsub.s32 0, %v243
        %v245 = vsel %vm239, %v244, %v243
        %vm246 = vcmp.lt.s32.totalorder %v230, 0
        %v247 = vsub.s32 0, %v230
        %v248 = vsel %vm246, %v247, %v230
        %v249 = vshrl.u32 %v248, 8
        %v250 = vand.u32 %v248, 255
        %v251 = vsub.s32 0, %v250
        %v252 = vsel %vm246, %v251, %v250
        %vm253 = vcmp.lt.s32.totalorder %v231, 0
        %v254 = vsub.s32 0, %v231
        %v255 = vsel %vm253, %v254, %v231
        %v256 = vshrl.u32 %v255, 8
        %v257 = vand.u32 %v255, 255
        %v258 = vsub.s32 0, %v257
        %v259 = vsel %vm253, %v258, %v257
        %vm260 = vcmp.ne.s32.totalorder %v238, 0
        %vm261 = vcmp.ne.s32.totalorder %v245, 0
        %vm262 = vcmp.ne.s32.totalorder %v252, 0
        %vm263 = vcmp.ne.s32.totalorder %v259, 0
        %vm264 = vcmp.lt.s32.totalorder %v238, 0
        %vm265 = vcmp.lt.s32.totalorder %v245, 0
        %vm266 = vcmp.lt.s32.totalorder %v252, 0
        %vm267 = vcmp.lt.s32.totalorder %v259, 0
        %vm268 = vmand %vm264, %vm260
        %vm269 = vmand %vm265, %vm261
        %vm270 = vmand %vm266, %vm262
        %vm271 = vmand %vm267, %vm263
        %v272 = vadd.s32 %v238, 256
        %v273 = vadd.s32 %v245, 256
        %v274 = vadd.s32 %v252, 256
        %v275 = vadd.s32 %v259, 256
        %v276 = vsel %vm268, %v272, %v238
        %v277 = vsel %vm269, %v273, %v245
        %v278 = vsel %vm270, %v274, %v252
        %v279 = vsel %vm271, %v275, %v259
        %vm280 = vcmp.lt.s32.totalorder %v228, 0
        %v281 = vsub.s32 0, %v228
        %v282 = vsel %vm280, %v281, %v228
        %v283 = vshrl.u32 %v282, 4
        %v284 = vand.u32 %v282, 15
        %v285 = vsub.s32 0, %v284
        %v286 = vsel %vm280, %v285, %v284
        %vm287 = vcmp.lt.s32.totalorder %v229, 0
        %v288 = vsub.s32 0, %v229
        %v289 = vsel %vm287, %v288, %v229
        %v290 = vshrl.u32 %v289, 4
        %v291 = vand.u32 %v289, 15
        %v292 = vsub.s32 0, %v291
        %v293 = vsel %vm287, %v292, %v291
        %vm294 = vcmp.lt.s32.totalorder %v230, 0
        %v295 = vsub.s32 0, %v230
        %v296 = vsel %vm294, %v295, %v230
        %v297 = vshrl.u32 %v296, 4
        %v298 = vand.u32 %v296, 15
        %v299 = vsub.s32 0, %v298
        %v300 = vsel %vm294, %v299, %v298
        %vm301 = vcmp.lt.s32.totalorder %v231, 0
        %v302 = vsub.s32 0, %v231
        %v303 = vsel %vm301, %v302, %v231
        %v304 = vshrl.u32 %v303, 4
        %v305 = vand.u32 %v303, 15
        %v306 = vsub.s32 0, %v305
        %v307 = vsel %vm301, %v306, %v305
        %vm308 = vcmp.ne.s32.totalorder %v286, 0
        %vm309 = vcmp.ne.s32.totalorder %v293, 0
        %vm310 = vcmp.ne.s32.totalorder %v300, 0
        %vm311 = vcmp.ne.s32.totalorder %v307, 0
        %vm312 = vcmp.lt.s32.totalorder %v286, 0
        %vm313 = vcmp.lt.s32.totalorder %v293, 0
        %vm314 = vcmp.lt.s32.totalorder %v300, 0
        %vm315 = vcmp.lt.s32.totalorder %v307, 0
        %vm316 = vmand %vm312, %vm308
        %vm317 = vmand %vm313, %vm309
        %vm318 = vmand %vm314, %vm310
        %vm319 = vmand %vm315, %vm311
        %v320 = vadd.s32 %v286, 16
        %v321 = vadd.s32 %v293, 16
        %v322 = vadd.s32 %v300, 16
        %v323 = vadd.s32 %v307, 16
        %v324 = vsel %vm316, %v320, %v286
        %v325 = vsel %vm317, %v321, %v293
        %v326 = vsel %vm318, %v322, %v300
        %v327 = vsel %vm319, %v323, %v307
        %v328 = vld [vmem:[#allocation7] sm:$0xff]
        %v329 = vld [vmem:[#allocation5] sm:$0xf]
        %330 = vrot.lane.b32.xlu0 %v222, 17
        %v331 = vpop.permute.xlu0 %330
        %332 = vrot.lane.b32.xlu0 %v223, 17
        %v333 = vpop.permute.xlu0 %332
        %334 = vrot.lane.b32.xlu0 %v225, 17
        %v335 = vpop.permute.xlu0 %334
        %336 = vrot.lane.b32.xlu0 %v226, 17
        %v337 = vpop.permute.xlu0 %336
        %vm338 = vcmp.lt.s32.totalorder %v228, 17
        %v339 = vsel %vm338, %v335, %v337
        %v340 = vsel %vm338, %v333, %v335
        %v341 = vsel %vm338, %v331, %v333
        %v342 = vsel %vm338, %v337, %v331
        %v343 = vpack.c.bf16 %v342, %v342
        %v344 = vpack.c.bf16 %v341, %v341
        %v345 = vpack.c.bf16 %v340, %v340
        %v346 = vpack.c.bf16 %v339, %v339
        %vm347 = vcmp.ge.s32.totalorder %v276, 16
        %vm348 = vcmp.ge.s32.totalorder %v277, 16
        %vm349 = vcmp.ge.s32.totalorder %v278, 16
        %vm350 = vcmp.ge.s32.totalorder %v279, 16
        %vm351 = vcmp.ge.s32.totalorder %v324, 1
        %vm352 = vcmp.ge.s32.totalorder %v325, 1
        %vm353 = vcmp.ge.s32.totalorder %v326, 1
        %vm354 = vcmp.ge.s32.totalorder %v327, 1
        %vm355 = vmand %vm347, %vm351
        %vm356 = vmand %vm348, %vm352
        %vm357 = vmand %vm349, %vm353
        %vm358 = vmand %vm350, %vm354
        %vm359 = vmpackc.low %vm356, %vm355
        %vm360 = vmpackc.low %vm358, %vm357
        %v361 = vsel %vm359, 65537, 0
        %v362 = vsel %vm360, 65537, 0
        %v363 = vlaneseq
        %v364 = vshrl.u32 %v363, 7
        %v365 = vsub.s32 0, %v364
        %v366 = vrot.slane %v361, %v365
        %v367 = vlaneseq
        %v368 = vshrl.u32 %v367, 7
        %v369 = vsub.s32 4, %v368
        %v370 = vrot.slane %v361, %v369
        %v371 = vlaneseq
        %v372 = vshrl.u32 %v371, 7
        %v373 = vsub.s32 0, %v372
        %v374 = vrot.slane %v362, %v373
        %v375 = vlaneseq
        %v376 = vshrl.u32 %v375, 7
        %v377 = vsub.s32 4, %v376
        %v378 = vrot.slane %v362, %v377
        %vm379 = vcmp.ne.s16.totalorder %v366, 0
        %vm380 = vcmp.ne.s16.totalorder %v370, 0
        %vm381 = vcmp.ne.s16.totalorder %v374, 0
        %vm382 = vcmp.ne.s16.totalorder %v378, 0
        %v383 = vsel %vm379, %v343, 0
        %v384 = vsel %vm380, %v344, 0
        %v385 = vsel %vm381, %v345, 0
        %v386 = vsel %vm382, %v346, 0
        %387 = vrot.lane.b32.xlu0 %v222, 16
        %v388 = vpop.permute.xlu0 %387
        %389 = vrot.lane.b32.xlu0 %v223, 16
        %v390 = vpop.permute.xlu0 %389
        %391 = vrot.lane.b32.xlu0 %v225, 16
        %v392 = vpop.permute.xlu0 %391
        %393 = vrot.lane.b32.xlu0 %v226, 16
        %v394 = vpop.permute.xlu0 %393
        %vm395 = vcmp.lt.s32.totalorder %v228, 16
        %v396 = vsel %vm395, %v392, %v394
        %v397 = vsel %vm395, %v390, %v392
        %v398 = vsel %vm395, %v388, %v390
        %v399 = vsel %vm395, %v394, %v388
        %v400 = vpack.c.bf16 %v399, %v399
        %v401 = vpack.c.bf16 %v398, %v398
        %v402 = vpack.c.bf16 %v397, %v397
        %v403 = vpack.c.bf16 %v396, %v396
        %vm404 = vmpackc.low %vm348, %vm347
        %vm405 = vmpackc.low %vm350, %vm349
        %v406 = vsel %vm404, 65537, 0
        %v407 = vsel %vm405, 65537, 0
        %v408 = vlaneseq
        %v409 = vshrl.u32 %v408, 7
        %v410 = vsub.s32 0, %v409
        %v411 = vrot.slane %v406, %v410
        %v412 = vlaneseq
        %v413 = vshrl.u32 %v412, 7
        %v414 = vsub.s32 4, %v413
        %v415 = vrot.slane %v406, %v414
        %v416 = vlaneseq
        %v417 = vshrl.u32 %v416, 7
        %v418 = vsub.s32 0, %v417
        %v419 = vrot.slane %v407, %v418
        %v420 = vlaneseq
        %v421 = vshrl.u32 %v420, 7
        %v422 = vsub.s32 4, %v421
        %v423 = vrot.slane %v407, %v422
        %vm424 = vcmp.ne.s16.totalorder %v411, 0
        %vm425 = vcmp.ne.s16.totalorder %v415, 0
        %vm426 = vcmp.ne.s16.totalorder %v419, 0
        %vm427 = vcmp.ne.s16.totalorder %v423, 0
        %v428 = vsel %vm424, %v400, 0
        %v429 = vsel %vm425, %v401, 0
        %v430 = vsel %vm426, %v402, 0
        %v431 = vsel %vm427, %v403, 0
        %432 = vrot.lane.b32.xlu0 %v222, 15
        %v433 = vpop.permute.xlu0 %432
        %434 = vrot.lane.b32.xlu0 %v223, 15
        %v435 = vpop.permute.xlu0 %434
        %436 = vrot.lane.b32.xlu0 %v225, 15
        %v437 = vpop.permute.xlu0 %436
        %438 = vrot.lane.b32.xlu0 %v226, 15
        %v439 = vpop.permute.xlu0 %438
        %vm440 = vcmp.lt.s32.totalorder %v228, 15
        %v441 = vsel %vm440, %v437, %v439
        %v442 = vsel %vm440, %v435, %v437
        %v443 = vsel %vm440, %v433, %v435
        %v444 = vsel %vm440, %v439, %v433
        %v445 = vpack.c.bf16 %v444, %v444
        %v446 = vpack.c.bf16 %v443, %v443
        %v447 = vpack.c.bf16 %v442, %v442
        %v448 = vpack.c.bf16 %v441, %v441
        %vm449 = vcmp.lt.s32.totalorder %v324, 15
        %vm450 = vcmp.lt.s32.totalorder %v325, 15
        %vm451 = vcmp.lt.s32.totalorder %v326, 15
        %vm452 = vcmp.lt.s32.totalorder %v327, 15
        %vm453 = vmand %vm347, %vm449
        %vm454 = vmand %vm348, %vm450
        %vm455 = vmand %vm349, %vm451
        %vm456 = vmand %vm350, %vm452
        %vm457 = vmpackc.low %vm454, %vm453
        %vm458 = vmpackc.low %vm456, %vm455
        %v459 = vsel %vm457, 65537, 0
        %v460 = vsel %vm458, 65537, 0
        %v461 = vlaneseq
        %v462 = vshrl.u32 %v461, 7
        %v463 = vsub.s32 0, %v462
        %v464 = vrot.slane %v459, %v463
        %v465 = vlaneseq
        %v466 = vshrl.u32 %v465, 7
        %v467 = vsub.s32 4, %v466
        %v468 = vrot.slane %v459, %v467
        %v469 = vlaneseq
        %v470 = vshrl.u32 %v469, 7
        %v471 = vsub.s32 0, %v470
        %v472 = vrot.slane %v460, %v471
        %v473 = vlaneseq
        %v474 = vshrl.u32 %v473, 7
        %v475 = vsub.s32 4, %v474
        %v476 = vrot.slane %v460, %v475
        %vm477 = vcmp.ne.s16.totalorder %v464, 0
        %vm478 = vcmp.ne.s16.totalorder %v468, 0
        %vm479 = vcmp.ne.s16.totalorder %v472, 0
        %vm480 = vcmp.ne.s16.totalorder %v476, 0
        %v481 = vsel %vm477, %v445, 0
        %v482 = vsel %vm478, %v446, 0
        %v483 = vsel %vm479, %v447, 0
        %v484 = vsel %vm480, %v448, 0
        %485 = vrot.lane.b32.xlu0 %v222, 1
        %v486 = vpop.permute.xlu0 %485
        %487 = vrot.lane.b32.xlu0 %v223, 1
        %v488 = vpop.permute.xlu0 %487
        %489 = vrot.lane.b32.xlu0 %v225, 1
        %v490 = vpop.permute.xlu0 %489
        %491 = vrot.lane.b32.xlu0 %v226, 1
        %v492 = vpop.permute.xlu0 %491
        %vm493 = vcmp.lt.s32.totalorder %v228, 1
        %v494 = vsel %vm493, %v490, %v492
        %v495 = vsel %vm493, %v488, %v490
        %v496 = vsel %vm493, %v486, %v488
        %v497 = vsel %vm493, %v492, %v486
        %v498 = vpack.c.bf16 %v497, %v497
        %v499 = vpack.c.bf16 %v496, %v496
        %v500 = vpack.c.bf16 %v495, %v495
        %v501 = vpack.c.bf16 %v494, %v494
        %vm502 = vmpackc.low %vm352, %vm351
        %vm503 = vmpackc.low %vm354, %vm353
        %v504 = vsel %vm502, 65537, 0
        %v505 = vsel %vm503, 65537, 0
        %v506 = vlaneseq
        %v507 = vshrl.u32 %v506, 7
        %v508 = vsub.s32 0, %v507
        %v509 = vrot.slane %v504, %v508
        %v510 = vlaneseq
        %v511 = vshrl.u32 %v510, 7
        %v512 = vsub.s32 4, %v511
        %v513 = vrot.slane %v504, %v512
        %v514 = vlaneseq
        %v515 = vshrl.u32 %v514, 7
        %v516 = vsub.s32 0, %v515
        %v517 = vrot.slane %v505, %v516
        %v518 = vlaneseq
        %v519 = vshrl.u32 %v518, 7
        %v520 = vsub.s32 4, %v519
        %v521 = vrot.slane %v505, %v520
        %vm522 = vcmp.ne.s16.totalorder %v509, 0
        %vm523 = vcmp.ne.s16.totalorder %v513, 0
        %vm524 = vcmp.ne.s16.totalorder %v517, 0
        %vm525 = vcmp.ne.s16.totalorder %v521, 0
        %v526 = vsel %vm522, %v498, 0
        %v527 = vsel %vm523, %v499, 0
        %v528 = vsel %vm524, %v500, 0
        %v529 = vsel %vm525, %v501, 0
        %v530 = vpack.c.bf16 %v222, %v222
        %v531 = vpack.c.bf16 %v223, %v223
        %v532 = vpack.c.bf16 %v225, %v225
        %v533 = vpack.c.bf16 %v226, %v226
        %534 = vrot.lane.b32.xlu0 %v222, 127
        %v535 = vpop.permute.xlu0 %534
        %536 = vrot.lane.b32.xlu0 %v223, 127
        %v537 = vpop.permute.xlu0 %536
        %538 = vrot.lane.b32.xlu0 %v225, 127
        %v539 = vpop.permute.xlu0 %538
        %540 = vrot.lane.b32.xlu0 %v226, 127
        %v541 = vpop.permute.xlu0 %540
        %vm542 = vcmp.lt.s32.totalorder %v228, 127
        %v543 = vsel %vm542, %v539, %v541
        %v544 = vsel %vm542, %v537, %v539
        %v545 = vsel %vm542, %v535, %v537
        %v546 = vsel %vm542, %v541, %v535
        %v547 = vpack.c.bf16 %v545, %v545
        %v548 = vpack.c.bf16 %v544, %v544
        %v549 = vpack.c.bf16 %v543, %v543
        %v550 = vpack.c.bf16 %v546, %v546
        %vm551 = vmpackc.low %vm450, %vm449
        %vm552 = vmpackc.low %vm452, %vm451
        %v553 = vsel %vm551, 65537, 0
        %v554 = vsel %vm552, 65537, 0
        %v555 = vlaneseq
        %v556 = vshrl.u32 %v555, 7
        %v557 = vsub.s32 0, %v556
        %v558 = vrot.slane %v553, %v557
        %v559 = vlaneseq
        %v560 = vshrl.u32 %v559, 7
        %v561 = vsub.s32 4, %v560
        %v562 = vrot.slane %v553, %v561
        %v563 = vlaneseq
        %v564 = vshrl.u32 %v563, 7
        %v565 = vsub.s32 0, %v564
        %v566 = vrot.slane %v554, %v565
        %v567 = vlaneseq
        %v568 = vshrl.u32 %v567, 7
        %v569 = vsub.s32 4, %v568
        %v570 = vrot.slane %v554, %v569
        %vm571 = vcmp.ne.s16.totalorder %v558, 0
        %vm572 = vcmp.ne.s16.totalorder %v562, 0
        %vm573 = vcmp.ne.s16.totalorder %v566, 0
        %vm574 = vcmp.ne.s16.totalorder %v570, 0
        %v575 = vsel %vm571, %v547, 0
        %v576 = vsel %vm572, %v548, 0
        %v577 = vsel %vm573, %v549, 0
        %v578 = vsel %vm574, %v550, 0
        %579 = vrot.lane.b32.xlu0 %v222, 113
        %v580 = vpop.permute.xlu0 %579
        %581 = vrot.lane.b32.xlu0 %v223, 113
        %v582 = vpop.permute.xlu0 %581
        %583 = vrot.lane.b32.xlu0 %v225, 113
        %v584 = vpop.permute.xlu0 %583
        %585 = vrot.lane.b32.xlu0 %v226, 113
        %v586 = vpop.permute.xlu0 %585
        %vm587 = vcmp.lt.s32.totalorder %v228, 113
        %v588 = vsel %vm587, %v584, %v586
        %v589 = vsel %vm587, %v582, %v584
        %v590 = vsel %vm587, %v580, %v582
        %v591 = vsel %vm587, %v586, %v580
        %v592 = vpack.c.bf16 %v590, %v590
        %v593 = vpack.c.bf16 %v589, %v589
        %v594 = vpack.c.bf16 %v588, %v588
        %v595 = vpack.c.bf16 %v591, %v591
        %vm596 = vcmp.lt.s32.totalorder %v276, 240
        %vm597 = vcmp.lt.s32.totalorder %v277, 240
        %vm598 = vcmp.lt.s32.totalorder %v278, 240
        %vm599 = vcmp.lt.s32.totalorder %v279, 240
        %vm600 = vmand %vm596, %vm351
        %vm601 = vmand %vm597, %vm352
        %vm602 = vmand %vm598, %vm353
        %vm603 = vmand %vm599, %vm354
        %vm604 = vmpackc.low %vm601, %vm600
        %vm605 = vmpackc.low %vm603, %vm602
        %v606 = vsel %vm604, 65537, 0
        %v607 = vsel %vm605, 65537, 0
        %v608 = vlaneseq
        %v609 = vshrl.u32 %v608, 7
        %v610 = vsub.s32 0, %v609
        %v611 = vrot.slane %v606, %v610
        %v612 = vlaneseq
        %v613 = vshrl.u32 %v612, 7
        %v614 = vsub.s32 4, %v613
        %v615 = vrot.slane %v606, %v614
        %v616 = vlaneseq
        %v617 = vshrl.u32 %v616, 7
        %v618 = vsub.s32 0, %v617
        %v619 = vrot.slane %v607, %v618
        %v620 = vlaneseq
        %v621 = vshrl.u32 %v620, 7
        %v622 = vsub.s32 4, %v621
        %v623 = vrot.slane %v607, %v622
        %vm624 = vcmp.ne.s16.totalorder %v611, 0
        %vm625 = vcmp.ne.s16.totalorder %v615, 0
        %vm626 = vcmp.ne.s16.totalorder %v619, 0
        %vm627 = vcmp.ne.s16.totalorder %v623, 0
        %v628 = vsel %vm624, %v592, 0
        %v629 = vsel %vm625, %v593, 0
        %v630 = vsel %vm626, %v594, 0
        %v631 = vsel %vm627, %v595, 0
        %632 = vrot.lane.b32.xlu0 %v222, 112
        %v633 = vpop.permute.xlu0 %632
        %634 = vrot.lane.b32.xlu0 %v223, 112
        %v635 = vpop.permute.xlu0 %634
        %636 = vrot.lane.b32.xlu0 %v225, 112
        %v637 = vpop.permute.xlu0 %636
        %638 = vrot.lane.b32.xlu0 %v226, 112
        %v639 = vpop.permute.xlu0 %638
        %vm640 = vcmp.lt.s32.totalorder %v228, 112
        %v641 = vsel %vm640, %v637, %v639
        %v642 = vsel %vm640, %v635, %v637
        %v643 = vsel %vm640, %v633, %v635
        %v644 = vsel %vm640, %v639, %v633
        %v645 = vpack.c.bf16 %v643, %v643
        %v646 = vpack.c.bf16 %v642, %v642
        %v647 = vpack.c.bf16 %v641, %v641
        %v648 = vpack.c.bf16 %v644, %v644
        %vm649 = vmpackc.low %vm597, %vm596
        %vm650 = vmpackc.low %vm599, %vm598
        %v651 = vsel %vm649, 65537, 0
        %v652 = vsel %vm650, 65537, 0
        %v653 = vlaneseq
        %v654 = vshrl.u32 %v653, 7
        %v655 = vsub.s32 0, %v654
        %v656 = vrot.slane %v651, %v655
        %v657 = vlaneseq
        %v658 = vshrl.u32 %v657, 7
        %v659 = vsub.s32 4, %v658
        %v660 = vrot.slane %v651, %v659
        %v661 = vlaneseq
        %v662 = vshrl.u32 %v661, 7
        %v663 = vsub.s32 0, %v662
        %v664 = vrot.slane %v652, %v663
        %v665 = vlaneseq
        %v666 = vshrl.u32 %v665, 7
        %v667 = vsub.s32 4, %v666
        %v668 = vrot.slane %v652, %v667
        %vm669 = vcmp.ne.s16.totalorder %v656, 0
        %vm670 = vcmp.ne.s16.totalorder %v660, 0
        %vm671 = vcmp.ne.s16.totalorder %v664, 0
        %vm672 = vcmp.ne.s16.totalorder %v668, 0
        %v673 = vsel %vm669, %v645, 0
        %v674 = vsel %vm670, %v646, 0
        %v675 = vsel %vm671, %v647, 0
        %v676 = vsel %vm672, %v648, 0
        %677 = vrot.lane.b32.xlu0 %v222, 111
        %v678 = vpop.permute.xlu0 %677
        %679 = vrot.lane.b32.xlu0 %v223, 111
        %v680 = vpop.permute.xlu0 %679
        %681 = vrot.lane.b32.xlu0 %v225, 111
        %v682 = vpop.permute.xlu0 %681
        %683 = vrot.lane.b32.xlu0 %v226, 111
        %v684 = vpop.permute.xlu0 %683
        %vm685 = vcmp.lt.s32.totalorder %v228, 111
        %v686 = vsel %vm685, %v682, %v684
        %v687 = vsel %vm685, %v680, %v682
        %v688 = vsel %vm685, %v678, %v680
        %v689 = vsel %vm685, %v684, %v678
        %v690 = vpack.c.bf16 %v688, %v688
        %v691 = vpack.c.bf16 %v687, %v687
        %v692 = vpack.c.bf16 %v686, %v686
        %v693 = vpack.c.bf16 %v689, %v689
        %vm694 = vmand %vm596, %vm449
        %vm695 = vmand %vm597, %vm450
        %vm696 = vmand %vm598, %vm451
        %vm697 = vmand %vm599, %vm452
        %vm698 = vmpackc.low %vm695, %vm694
        %vm699 = vmpackc.low %vm697, %vm696
        %v700 = vsel %vm698, 65537, 0
        %v701 = vsel %vm699, 65537, 0
        %v702 = vlaneseq
        %v703 = vshrl.u32 %v702, 7
        %v704 = vsub.s32 0, %v703
        %v705 = vrot.slane %v700, %v704
        %v706 = vlaneseq
        %v707 = vshrl.u32 %v706, 7
        %v708 = vsub.s32 4, %v707
        %v709 = vrot.slane %v700, %v708
        %v710 = vlaneseq
        %v711 = vshrl.u32 %v710, 7
        %v712 = vsub.s32 0, %v711
        %v713 = vrot.slane %v701, %v712
        %v714 = vlaneseq
        %v715 = vshrl.u32 %v714, 7
        %v716 = vsub.s32 4, %v715
        %v717 = vrot.slane %v701, %v716
        %vm718 = vcmp.ne.s16.totalorder %v705, 0
        %vm719 = vcmp.ne.s16.totalorder %v709, 0
        %vm720 = vcmp.ne.s16.totalorder %v713, 0
        %vm721 = vcmp.ne.s16.totalorder %v717, 0
        %v722 = vsel %vm718, %v690, 0
        %v723 = vsel %vm719, %v691, 0
        %v724 = vsel %vm720, %v692, 0
        %v725 = vsel %vm721, %v693, 0
        %v730 = vrot.slane %v428, 4
        %v731 = vrot.slane %v429, 4
        %v732 = vrot.slane %v430, 4
        %v733 = vrot.slane %v431, 4
        %v738 = vrot.slane %v526, 4
        %v739 = vrot.slane %v527, 4
        %v740 = vrot.slane %v528, 4
        %v741 = vrot.slane %v529, 4
        %v746 = vrot.slane %v575, 4
        %v747 = vrot.slane %v576, 4
        %v748 = vrot.slane %v577, 4
        %v749 = vrot.slane %v578, 4
        %v754 = vrot.slane %v673, 4
        %v755 = vrot.slane %v674, 4
        %v756 = vrot.slane %v675, 4
        %v757 = vrot.slane %v676, 4
        %vm758 = vcmask 1043456
        %v761 = vsel %vm758, %v383, %v730
        %v765 = vsel %vm758, %v384, %v731
        %v769 = vsel %vm758, %v385, %v732
        %v773 = vsel %vm758, %v386, %v733
        %v777 = vsel %vm758, %v481, %v738
        %v781 = vsel %vm758, %v482, %v739
        %v785 = vsel %vm758, %v483, %v740
        %v789 = vsel %vm758, %v484, %v741
        %v793 = vsel %vm758, %v530, %v746
        %v797 = vsel %vm758, %v531, %v747
        %v801 = vsel %vm758, %v532, %v748
        %v805 = vsel %vm758, %v533, %v749
        %v809 = vsel %vm758, %v628, %v754
        %v813 = vsel %vm758, %v629, %v755
        %v817 = vsel %vm758, %v630, %v756
        %v821 = vsel %vm758, %v631, %v757
        %824 = vset.pattern.permute.xlu0 0
        %825 = vperm.xlu0 %824, %v328
        %v826 = vpop.permute.xlu0 %825
        %vm828 = vcmask 588800
        %v830 = vsel %vm828, %v329, 0
        %v833 = vsel %vm758, %v722, 0
        %v836 = vsel %vm758, %v723, 0
        %v839 = vsel %vm758, %v724, 0
        %v842 = vsel %vm758, %v725, 0
        %844 = vmatprep.subr.bf16.mxu0 0
        %845 = vmatpush1.bf16.msra.mxu0 0
        %846 = vmatprep.subr.bf16.mxu0 0
        %847 = vmatpush1.bf16.msra.mxu0 0
        %848 = vmatprep.subr.bf16.mxu0 0
        %849 = vmatpush1.bf16.msra.mxu0 0
        %850 = vmatprep.subr.bf16.mxu0 %v836
        %851 = vmatpush1.bf16.msra.mxu0 %v833
        %852 = vmatprep.subr.bf16.mxu0 %v813
        %853 = vmatpush1.bf16.msra.mxu0 %v809
        %854 = vmatprep.subr.bf16.mxu0 %v797
        %855 = vmatpush1.bf16.msra.mxu0 %v793
        %856 = vmatprep.subr.bf16.mxu0 %v781
        %857 = vmatpush1.bf16.msra.mxu0 %v777
        %858 = vmatprep.subr.bf16.mxu0 %v765
        %859 = vmatpush1.bf16.msra.mxu0 %v761
        %860 = vmatprep.subr.bf16.mxu0 0
        %861 = vmatpush2.bf16.msra.mxu0 0
        %862 = vmatprep.subr.bf16.mxu0 0
        %863 = vmatpush2.bf16.msra.mxu0 0
        %864 = vmatprep.subr.bf16.mxu0 0
        %865 = vmatpush2.bf16.msra.mxu0 0
        %866 = vmatprep.subr.bf16.mxu0 0
        %867 = vmatpush2.bf16.msra.mxu0 0
        %868 = vmatprep.subr.bf16.mxu0 0
        %869 = vmatpush2.bf16.msra.mxu0 0
        %870 = vmatprep.subr.bf16.mxu0 0
        %871 = vmatpush2.bf16.msra.mxu0 0
        %872 = vmatprep.subr.bf16.mxu0 0
        %873 = vmatpush2.bf16.msra.mxu0 0
        %874 = vmatprep.subr.bf16.mxu0 0
        %875 = vmatpush2.bf16.msra.mxu0 0
        %876 = vmatprep.mubr.bf16.mxu0 0
        %877 = vmatmul.mubr.bf16.gmra.mxu0 %v830
        %v878 = vpop.f32.mrf.mxu0
        %v879 = vadd.f32 %v826, %v878
        %v880 = vpop.f32.mrf.mxu0
        %v881 = vadd.f32 %v826, %v880
        %v882 = vpop.f32.mrf.mxu0
        %v883 = vpop.f32.mrf.mxu0
        %884 = vdwg.mxu0
        %885 = vmatprep.subr.bf16.mxu0 0
        %886 = vmatpush1.bf16.msra.mxu0 0
        %887 = vmatprep.subr.bf16.mxu0 0
        %888 = vmatpush1.bf16.msra.mxu0 0
        %889 = vmatprep.subr.bf16.mxu0 0
        %890 = vmatpush1.bf16.msra.mxu0 0
        %891 = vmatprep.subr.bf16.mxu0 %v842
        %892 = vmatpush1.bf16.msra.mxu0 %v839
        %893 = vmatprep.subr.bf16.mxu0 %v821
        %894 = vmatpush1.bf16.msra.mxu0 %v817
        %895 = vmatprep.subr.bf16.mxu0 %v805
        %896 = vmatpush1.bf16.msra.mxu0 %v801
        %897 = vmatprep.subr.bf16.mxu0 %v789
        %898 = vmatpush1.bf16.msra.mxu0 %v785
        %899 = vmatprep.subr.bf16.mxu0 %v773
        %900 = vmatpush1.bf16.msra.mxu0 %v769
        %901 = vmatprep.subr.bf16.mxu0 0
        %902 = vmatpush2.bf16.msra.mxu0 0
        %903 = vmatprep.subr.bf16.mxu0 0
        %904 = vmatpush2.bf16.msra.mxu0 0
        %905 = vmatprep.subr.bf16.mxu0 0
        %906 = vmatpush2.bf16.msra.mxu0 0
        %907 = vmatprep.subr.bf16.mxu0 0
        %908 = vmatpush2.bf16.msra.mxu0 0
        %909 = vmatprep.subr.bf16.mxu0 0
        %910 = vmatpush2.bf16.msra.mxu0 0
        %911 = vmatprep.subr.bf16.mxu0 0
        %912 = vmatpush2.bf16.msra.mxu0 0
        %913 = vmatprep.subr.bf16.mxu0 0
        %914 = vmatpush2.bf16.msra.mxu0 0
        %915 = vmatprep.subr.bf16.mxu0 0
        %916 = vmatpush2.bf16.msra.mxu0 0
        %917 = vmatprep.mubr.bf16.mxu0 0
        %918 = vmatmul.mubr.bf16.gmra.mxu0 %v830
        %v919 = vpop.f32.mrf.mxu0
        %v920 = vadd.f32 %v826, %v919
        %v921 = vpop.f32.mrf.mxu0
        %v922 = vadd.f32 %v826, %v921
        %v923 = vpop.f32.mrf.mxu0
        %v924 = vpop.f32.mrf.mxu0
        %925 = vdwg.mxu0
        %v926 = vmax.f32 %v879, 0.0
        %v927 = vmax.f32 %v881, 0.0
        %v928 = vmax.f32 %v920, 0.0
        %v929 = vmax.f32 %v922, 0.0
        %s930 = scalar_lea.vmem [#allocation5], 4
        %v931 = vld [vmem:[%s930] sm:$0xf]
        %932 = vrot.lane.b32.xlu0 %v926, 17
        %v933 = vpop.permute.xlu0 %932
        %934 = vrot.lane.b32.xlu0 %v927, 17
        %v935 = vpop.permute.xlu0 %934
        %936 = vrot.lane.b32.xlu0 %v928, 17
        %v937 = vpop.permute.xlu0 %936
        %938 = vrot.lane.b32.xlu0 %v929, 17
        %v939 = vpop.permute.xlu0 %938
        %v940 = vsel %vm338, %v937, %v939
        %v941 = vsel %vm338, %v935, %v937
        %v942 = vsel %vm338, %v933, %v935
        %v943 = vsel %vm338, %v939, %v933
        %v944 = vpack.c.bf16 %v943, %v943
        %v945 = vpack.c.bf16 %v942, %v942
        %v946 = vpack.c.bf16 %v941, %v941
        %v947 = vpack.c.bf16 %v940, %v940
        %v948 = vsel %vm379, %v944, 0
        %v949 = vsel %vm380, %v945, 0
        %v950 = vsel %vm381, %v946, 0
        %v951 = vsel %vm382, %v947, 0
        %952 = vrot.lane.b32.xlu0 %v926, 16
        %v953 = vpop.permute.xlu0 %952
        %954 = vrot.lane.b32.xlu0 %v927, 16
        %v955 = vpop.permute.xlu0 %954
        %956 = vrot.lane.b32.xlu0 %v928, 16
        %v957 = vpop.permute.xlu0 %956
        %958 = vrot.lane.b32.xlu0 %v929, 16
        %v959 = vpop.permute.xlu0 %958
        %v960 = vsel %vm395, %v957, %v959
        %v961 = vsel %vm395, %v955, %v957
        %v962 = vsel %vm395, %v953, %v955
        %v963 = vsel %vm395, %v959, %v953
        %v964 = vpack.c.bf16 %v963, %v963
        %v965 = vpack.c.bf16 %v962, %v962
        %v966 = vpack.c.bf16 %v961, %v961
        %v967 = vpack.c.bf16 %v960, %v960
        %v968 = vsel %vm424, %v964, 0
        %v969 = vsel %vm425, %v965, 0
        %v970 = vsel %vm426, %v966, 0
        %v971 = vsel %vm427, %v967, 0
        %972 = vrot.lane.b32.xlu0 %v926, 15
        %v973 = vpop.permute.xlu0 %972
        %974 = vrot.lane.b32.xlu0 %v927, 15
        %v975 = vpop.permute.xlu0 %974
        %976 = vrot.lane.b32.xlu0 %v928, 15
        %v977 = vpop.permute.xlu0 %976
        %978 = vrot.lane.b32.xlu0 %v929, 15
        %v979 = vpop.permute.xlu0 %978
        %v980 = vsel %vm440, %v977, %v979
        %v981 = vsel %vm440, %v975, %v977
        %v982 = vsel %vm440, %v973, %v975
        %v983 = vsel %vm440, %v979, %v973
        %v984 = vpack.c.bf16 %v983, %v983
        %v985 = vpack.c.bf16 %v982, %v982
        %v986 = vpack.c.bf16 %v981, %v981
        %v987 = vpack.c.bf16 %v980, %v980
        %v988 = vsel %vm477, %v984, 0
        %v989 = vsel %vm478, %v985, 0
        %v990 = vsel %vm479, %v986, 0
        %v991 = vsel %vm480, %v987, 0
        %992 = vrot.lane.b32.xlu0 %v926, 1
        %v993 = vpop.permute.xlu0 %992
        %994 = vrot.lane.b32.xlu0 %v927, 1
        %v995 = vpop.permute.xlu0 %994
        %996 = vrot.lane.b32.xlu0 %v928, 1
        %v997 = vpop.permute.xlu0 %996
        %998 = vrot.lane.b32.xlu0 %v929, 1
        %v999 = vpop.permute.xlu0 %998
        %v1000 = vsel %vm493, %v997, %v999
        %v1001 = vsel %vm493, %v995, %v997
        %v1002 = vsel %vm493, %v993, %v995
        %v1003 = vsel %vm493, %v999, %v993
        %v1004 = vpack.c.bf16 %v1003, %v1003
        %v1005 = vpack.c.bf16 %v1002, %v1002
        %v1006 = vpack.c.bf16 %v1001, %v1001
        %v1007 = vpack.c.bf16 %v1000, %v1000
        %v1008 = vsel %vm522, %v1004, 0
        %v1009 = vsel %vm523, %v1005, 0
        %v1010 = vsel %vm524, %v1006, 0
        %v1011 = vsel %vm525, %v1007, 0
        %v1012 = vpack.c.bf16 %v926, %v926
        %v1013 = vpack.c.bf16 %v927, %v927
        %v1014 = vpack.c.bf16 %v928, %v928
        %v1015 = vpack.c.bf16 %v929, %v929
        %1016 = vrot.lane.b32.xlu0 %v926, 127
        %v1017 = vpop.permute.xlu0 %1016
        %1018 = vrot.lane.b32.xlu0 %v927, 127
        %v1019 = vpop.permute.xlu0 %1018
        %1020 = vrot.lane.b32.xlu0 %v928, 127
        %v1021 = vpop.permute.xlu0 %1020
        %1022 = vrot.lane.b32.xlu0 %v929, 127
        %v1023 = vpop.permute.xlu0 %1022
        %v1024 = vsel %vm542, %v1021, %v1023
        %v1025 = vsel %vm542, %v1019, %v1021
        %v1026 = vsel %vm542, %v1017, %v1019
        %v1027 = vsel %vm542, %v1023, %v1017
        %v1028 = vpack.c.bf16 %v1026, %v1026
        %v1029 = vpack.c.bf16 %v1025, %v1025
        %v1030 = vpack.c.bf16 %v1024, %v1024
        %v1031 = vpack.c.bf16 %v1027, %v1027
        %v1032 = vsel %vm571, %v1028, 0
        %v1033 = vsel %vm572, %v1029, 0
        %v1034 = vsel %vm573, %v1030, 0
        %v1035 = vsel %vm574, %v1031, 0
        %1036 = vrot.lane.b32.xlu0 %v926, 113
        %v1037 = vpop.permute.xlu0 %1036
        %1038 = vrot.lane.b32.xlu0 %v927, 113
        %v1039 = vpop.permute.xlu0 %1038
        %1040 = vrot.lane.b32.xlu0 %v928, 113
        %v1041 = vpop.permute.xlu0 %1040
        %1042 = vrot.lane.b32.xlu0 %v929, 113
        %v1043 = vpop.permute.xlu0 %1042
        %v1044 = vsel %vm587, %v1041, %v1043
        %v1045 = vsel %vm587, %v1039, %v1041
        %v1046 = vsel %vm587, %v1037, %v1039
        %v1047 = vsel %vm587, %v1043, %v1037
        %v1048 = vpack.c.bf16 %v1046, %v1046
        %v1049 = vpack.c.bf16 %v1045, %v1045
        %v1050 = vpack.c.bf16 %v1044, %v1044
        %v1051 = vpack.c.bf16 %v1047, %v1047
        %v1052 = vsel %vm624, %v1048, 0
        %v1053 = vsel %vm625, %v1049, 0
        %v1054 = vsel %vm626, %v1050, 0
        %v1055 = vsel %vm627, %v1051, 0
        %1056 = vrot.lane.b32.xlu0 %v926, 112
        %v1057 = vpop.permute.xlu0 %1056
        %1058 = vrot.lane.b32.xlu0 %v927, 112
        %v1059 = vpop.permute.xlu0 %1058
        %1060 = vrot.lane.b32.xlu0 %v928, 112
        %v1061 = vpop.permute.xlu0 %1060
        %1062 = vrot.lane.b32.xlu0 %v929, 112
        %v1063 = vpop.permute.xlu0 %1062
        %v1064 = vsel %vm640, %v1061, %v1063
        %v1065 = vsel %vm640, %v1059, %v1061
        %v1066 = vsel %vm640, %v1057, %v1059
        %v1067 = vsel %vm640, %v1063, %v1057
        %v1068 = vpack.c.bf16 %v1066, %v1066
        %v1069 = vpack.c.bf16 %v1065, %v1065
        %v1070 = vpack.c.bf16 %v1064, %v1064
        %v1071 = vpack.c.bf16 %v1067, %v1067
        %v1072 = vsel %vm669, %v1068, 0
        %v1073 = vsel %vm670, %v1069, 0
        %v1074 = vsel %vm671, %v1070, 0
        %v1075 = vsel %vm672, %v1071, 0
        %1076 = vrot.lane.b32.xlu0 %v926, 111
        %v1077 = vpop.permute.xlu0 %1076
        %1078 = vrot.lane.b32.xlu0 %v927, 111
        %v1079 = vpop.permute.xlu0 %1078
        %1080 = vrot.lane.b32.xlu0 %v928, 111
        %v1081 = vpop.permute.xlu0 %1080
        %1082 = vrot.lane.b32.xlu0 %v929, 111
        %v1083 = vpop.permute.xlu0 %1082
        %v1084 = vsel %vm685, %v1081, %v1083
        %v1085 = vsel %vm685, %v1079, %v1081
        %v1086 = vsel %vm685, %v1077, %v1079
        %v1087 = vsel %vm685, %v1083, %v1077
        %v1088 = vpack.c.bf16 %v1086, %v1086
        %v1089 = vpack.c.bf16 %v1085, %v1085
        %v1090 = vpack.c.bf16 %v1084, %v1084
        %v1091 = vpack.c.bf16 %v1087, %v1087
        %v1092 = vsel %vm718, %v1088, 0
        %v1093 = vsel %vm719, %v1089, 0
        %v1094 = vsel %vm720, %v1090, 0
        %v1095 = vsel %vm721, %v1091, 0
        %v1100 = vrot.slane %v968, 4
        %v1101 = vrot.slane %v969, 4
        %v1102 = vrot.slane %v970, 4
        %v1103 = vrot.slane %v971, 4
        %v1108 = vrot.slane %v1008, 4
        %v1109 = vrot.slane %v1009, 4
        %v1110 = vrot.slane %v1010, 4
        %v1111 = vrot.slane %v1011, 4
        %v1116 = vrot.slane %v1032, 4
        %v1117 = vrot.slane %v1033, 4
        %v1118 = vrot.slane %v1034, 4
        %v1119 = vrot.slane %v1035, 4
        %v1124 = vrot.slane %v1072, 4
        %v1125 = vrot.slane %v1073, 4
        %v1126 = vrot.slane %v1074, 4
        %v1127 = vrot.slane %v1075, 4
        %v1130 = vsel %vm758, %v948, %v1100
        %v1134 = vsel %vm758, %v949, %v1101
        %v1138 = vsel %vm758, %v950, %v1102
        %v1142 = vsel %vm758, %v951, %v1103
        %v1146 = vsel %vm758, %v988, %v1108
        %v1150 = vsel %vm758, %v989, %v1109
        %v1154 = vsel %vm758, %v990, %v1110
        %v1158 = vsel %vm758, %v991, %v1111
        %v1162 = vsel %vm758, %v1012, %v1116
        %v1166 = vsel %vm758, %v1013, %v1117
        %v1170 = vsel %vm758, %v1014, %v1118
        %v1174 = vsel %vm758, %v1015, %v1119
        %v1178 = vsel %vm758, %v1052, %v1124
        %v1182 = vsel %vm758, %v1053, %v1125
        %v1186 = vsel %vm758, %v1054, %v1126
        %v1190 = vsel %vm758, %v1055, %v1127
        %1192 = vset.pattern.permute.xlu0 1
        %1193 = vperm.xlu0 %1192, %v328
        %v1194 = vpop.permute.xlu0 %1193
        %v1197 = vsel %vm828, %v931, 0
        %v1200 = vsel %vm758, %v1092, 0
        %v1203 = vsel %vm758, %v1093, 0
        %v1206 = vsel %vm758, %v1094, 0
        %v1209 = vsel %vm758, %v1095, 0
        %1211 = vmatprep.subr.bf16.mxu0 0
        %1212 = vmatpush1.bf16.msra.mxu0 0
        %1213 = vmatprep.subr.bf16.mxu0 0
        %1214 = vmatpush1.bf16.msra.mxu0 0
        %1215 = vmatprep.subr.bf16.mxu0 0
        %1216 = vmatpush1.bf16.msra.mxu0 0
        %1217 = vmatprep.subr.bf16.mxu0 %v1203
        %1218 = vmatpush1.bf16.msra.mxu0 %v1200
        %1219 = vmatprep.subr.bf16.mxu0 %v1182
        %1220 = vmatpush1.bf16.msra.mxu0 %v1178
        %1221 = vmatprep.subr.bf16.mxu0 %v1166
        %1222 = vmatpush1.bf16.msra.mxu0 %v1162
        %1223 = vmatprep.subr.bf16.mxu0 %v1150
        %1224 = vmatpush1.bf16.msra.mxu0 %v1146
        %1225 = vmatprep.subr.bf16.mxu0 %v1134
        %1226 = vmatpush1.bf16.msra.mxu0 %v1130
        %1227 = vmatprep.subr.bf16.mxu0 0
        %1228 = vmatpush2.bf16.msra.mxu0 0
        %1229 = vmatprep.subr.bf16.mxu0 0
        %1230 = vmatpush2.bf16.msra.mxu0 0
        %1231 = vmatprep.subr.bf16.mxu0 0
        %1232 = vmatpush2.bf16.msra.mxu0 0
        %1233 = vmatprep.subr.bf16.mxu0 0
        %1234 = vmatpush2.bf16.msra.mxu0 0
        %1235 = vmatprep.subr.bf16.mxu0 0
        %1236 = vmatpush2.bf16.msra.mxu0 0
        %1237 = vmatprep.subr.bf16.mxu0 0
        %1238 = vmatpush2.bf16.msra.mxu0 0
        %1239 = vmatprep.subr.bf16.mxu0 0
        %1240 = vmatpush2.bf16.msra.mxu0 0
        %1241 = vmatprep.subr.bf16.mxu0 0
        %1242 = vmatpush2.bf16.msra.mxu0 0
        %1243 = vmatprep.mubr.bf16.mxu0 0
        %1244 = vmatmul.mubr.bf16.gmra.mxu0 %v1197
        %v1245 = vpop.f32.mrf.mxu0
        %v1246 = vadd.f32 %v1194, %v1245
        %v1247 = vpop.f32.mrf.mxu0
        %v1248 = vadd.f32 %v1194, %v1247
        %v1249 = vpop.f32.mrf.mxu0
        %v1250 = vpop.f32.mrf.mxu0
        %1251 = vdwg.mxu0
        %1252 = vmatprep.subr.bf16.mxu0 0
        %1253 = vmatpush1.bf16.msra.mxu0 0
        %1254 = vmatprep.subr.bf16.mxu0 0
        %1255 = vmatpush1.bf16.msra.mxu0 0
        %1256 = vmatprep.subr.bf16.mxu0 0
        %1257 = vmatpush1.bf16.msra.mxu0 0
        %1258 = vmatprep.subr.bf16.mxu0 %v1209
        %1259 = vmatpush1.bf16.msra.mxu0 %v1206
        %1260 = vmatprep.subr.bf16.mxu0 %v1190
        %1261 = vmatpush1.bf16.msra.mxu0 %v1186
        %1262 = vmatprep.subr.bf16.mxu0 %v1174
        %1263 = vmatpush1.bf16.msra.mxu0 %v1170
        %1264 = vmatprep.subr.bf16.mxu0 %v1158
        %1265 = vmatpush1.bf16.msra.mxu0 %v1154
        %1266 = vmatprep.subr.bf16.mxu0 %v1142
        %1267 = vmatpush1.bf16.msra.mxu0 %v1138
        %1268 = vmatprep.subr.bf16.mxu0 0
        %1269 = vmatpush2.bf16.msra.mxu0 0
        %1270 = vmatprep.subr.bf16.mxu0 0
        %1271 = vmatpush2.bf16.msra.mxu0 0
        %1272 = vmatprep.subr.bf16.mxu0 0
        %1273 = vmatpush2.bf16.msra.mxu0 0
        %1274 = vmatprep.subr.bf16.mxu0 0
        %1275 = vmatpush2.bf16.msra.mxu0 0
        %1276 = vmatprep.subr.bf16.mxu0 0
        %1277 = vmatpush2.bf16.msra.mxu0 0
        %1278 = vmatprep.subr.bf16.mxu0 0
        %1279 = vmatpush2.bf16.msra.mxu0 0
        %1280 = vmatprep.subr.bf16.mxu0 0
        %1281 = vmatpush2.bf16.msra.mxu0 0
        %1282 = vmatprep.subr.bf16.mxu0 0
        %1283 = vmatpush2.bf16.msra.mxu0 0
        %1284 = vmatprep.mubr.bf16.mxu0 0
        %1285 = vmatmul.mubr.bf16.gmra.mxu0 %v1197
        %v1286 = vpop.f32.mrf.mxu0
        %v1287 = vadd.f32 %v1194, %v1286
        %v1288 = vpop.f32.mrf.mxu0
        %v1289 = vadd.f32 %v1194, %v1288
        %v1290 = vpop.f32.mrf.mxu0
        %v1291 = vpop.f32.mrf.mxu0
        %1292 = vdwg.mxu0
        %v1293 = vadd.f32 %v1246, %v1248
        %1294 = vadd.xlane.f32.xlu0 %v1293
        %v1295 = vpop.xlane.xlu0 %1294
        %v1296 = vrcp.pop 256.0
        %v1297 = vmul.f32 %v1295, %v1296
        %v1298 = vmul.f32 %v328, %v1297
        %vm1299 = vcmask 39960
        %v1300 = vsel %vm1299, %v1298, 0.0
        %v1301 = vrot.slane %v1300, 4
        %v1302 = vadd.f32 %v1300, %v1301
        %v1303 = vrot.slane %v1302, 2
        %v1304 = vadd.f32 %v1302, %v1303
        %v1305 = vrot.slane %v1304, 1
        %v1306 = vadd.f32 %v1304, %v1305
        %1307 = vrot.lane.b32.xlu0 %v328, 124
        %v1308 = vpop.permute.xlu0 %1307
        %v1310 = vadd.f32 %v1306, %v1308
        %v1311 = vmax.f32 %v1310, 0.0
        %v1312 = vlaneseq
        %v1313 = vshrl.u32 %v1312, 7
        %v1314 = vsub.s32 0, %v1313
        %v1315 = vrot.slane %v1311, %v1314
        %1317 = vrot.lane.b32.xlu0 %v1315, 2
        %v1318 = vpop.permute.xlu0 %1317
        %v1320 = vmul.f32 %v328, %v1318
        %1322 = vrot.lane.b32.xlu0 %v1320, 123
        %v1323 = vpop.permute.xlu0 %1322
        %vm1325 = vcmask 15360
        %v1326 = vsel %vm1325, %v1323, 0.0
        %1327 = vadd.xlane.f32.xlu0 %v1326
        %v1328 = vpop.xlane.xlu0 %1327
        %v1329 = vadd.f32 %v1328, %v328
        %v1330 = vxor.u32 %v1329, 2147483648
        %v1331 = vmul.f32 %v1330, 1.442695
        %v1332 = vpow.pop %v1331
        %v1333 = vadd.f32 %v1332, 1.0
        %v1334 = vrcp.pop %v1333
        %v1335 = vmul.f32 1.0, %v1334
        %1337 = vset.pattern.permute.xlu0 2
        %1338 = vperm.xlu0 %1337, %v1335
        %v1339 = vpop.permute.xlu0 %1338
        %v1341 = vmul.f32 %v1246, %v1339
        %v1342 = vmul.f32 %v1248, %v1339
        %v1343 = vadd.f32 %v222, %v1341
        %v1344 = vadd.f32 %v223, %v1342
        %1345 = vst [vmem:[%s216] sm:$0xff] %v1343
        %1346 = vst [vmem:[%s216 + $0x8] sm:$0xff] %v1344
        %v1347 = vadd.f32 %v1287, %v1289
        %1348 = vadd.xlane.f32.xlu0 %v1347
        %v1349 = vpop.xlane.xlu0 %1348
        %v1350 = vmul.f32 %v1349, %v1296
        %v1351 = vmul.f32 %v328, %v1350
        %v1352 = vsel %vm1299, %v1351, 0.0
        %v1353 = vrot.slane %v1352, 4
        %v1354 = vadd.f32 %v1352, %v1353
        %v1355 = vrot.slane %v1354, 2
        %v1356 = vadd.f32 %v1354, %v1355
        %v1357 = vrot.slane %v1356, 1
        %v1358 = vadd.f32 %v1356, %v1357
        %v1359 = vadd.f32 %v1358, %v1308
        %v1360 = vmax.f32 %v1359, 0.0
        %v1361 = vlaneseq
        %v1362 = vshrl.u32 %v1361, 7
        %v1363 = vsub.s32 0, %v1362
        %v1364 = vrot.slane %v1360, %v1363
        %1366 = vrot.lane.b32.xlu0 %v1364, 2
        %v1367 = vpop.permute.xlu0 %1366
        %v1369 = vmul.f32 %v328, %v1367
        %1371 = vrot.lane.b32.xlu0 %v1369, 123
        %v1372 = vpop.permute.xlu0 %1371
        %v1374 = vsel %vm1325, %v1372, 0.0
        %1375 = vadd.xlane.f32.xlu0 %v1374
        %v1376 = vpop.xlane.xlu0 %1375
        %v1377 = vadd.f32 %v1376, %v328
        %v1378 = vxor.u32 %v1377, 2147483648
        %v1379 = vmul.f32 %v1378, 1.442695
        %v1380 = vpow.pop %v1379
        %v1381 = vadd.f32 %v1380, 1.0
        %v1382 = vrcp.pop %v1381
        %v1383 = vmul.f32 1.0, %v1382
        %1385 = vset.pattern.permute.xlu0 2
        %1386 = vperm.xlu0 %1385, %v1383
        %v1387 = vpop.permute.xlu0 %1386
        %v1389 = vmul.f32 %v1287, %v1387
        %v1390 = vmul.f32 %v1289, %v1387
        %v1391 = vadd.f32 %v225, %v1389
        %v1392 = vadd.f32 %v226, %v1390
        %s1393 = scalar_lea.vmem %s216, 16 [#allocation8]
        %1394 = vst [vmem:[%s1393] sm:$0xff] %v1391
        %1395 = vst [vmem:[%s1393 + $0x8] sm:$0xff] %v1392
        %s1396 = sand.u32 %s97, 1
        %s1397 = scalar_lea.sflag [#allocation4], %s1396
        %s1398 = sand.u32 %s97, 1
        %s1399 = smul.addr %s1398, 32
        %s1400 = scalar_lea.vmem [#allocation8], %s1399
        // Predicated region
        $region45: #{tpu_custom_call.1} parent=31 // pred_check
          %p1401 = pneg %p107
        $region46: #{tpu_custom_call.1} parent=31 // pred_check_branch
          %1403 = sbr.rel (%p1401) target = $region48
        $region47: #{tpu_custom_call.1} parent=31 // pred_region
          %s1404 = smul.u32 2, %s21
          %s1406 = ssub.s32 512, 512
          %1407 = vsyncadd %s1397, %s1406
          %s1408 = smul.addr %s1404, 2
          %s1409 = smul.addr %s1408, 128
          %s1410 = scalar_lea.hbm %s3, %s1409
          %s1411 = sshll.u32 %s1400, 4
          %s1412 = int_to_ptr.vmem [resolvable:$true] %s1411
          %1417 = dma.vmem_to_hbm [thread:$0]  %s1412, 512, %s1410, %s1397, 256, 256, 16
        $region48: #{tpu_custom_call.1} parent=31 // pred_fallthru
          _
      $region32: #{tpu_custom_call.1} parent=5 // pred_fallthru
        _
      %p1418 = scmp.le.s32.totalorder 2, %s16
      // Predicated region
      $region49: #{tpu_custom_call.1} parent=5 // pred_check
        %p1419 = pneg %p1418
      $region50: #{tpu_custom_call.1} parent=5 // pred_check_branch
        %1421 = sbr.rel (%p1419) target = $region52
      $region51: #{tpu_custom_call.1} parent=5 // pred_region
        %s1422 = ssub.s32 %s16, 2
        // Predicated region
        $region53: #{tpu_custom_call.1} parent=51 // pred_check
          %p1423 = pneg %p113
        $region54: #{tpu_custom_call.1} parent=51 // pred_check_branch
          %1425 = sbr.rel (%p1423) target = $region56
        $region55: #{tpu_custom_call.1} parent=51 // pred_region
          %s1426 = sand.u32 %s98, 1
          %s1427 = scalar_lea.sflag [#allocation4], %s1426
          %s1428 = sand.u32 %s98, 1
          %s1429 = smul.addr %s1428, 32
          %s1430 = scalar_lea.vmem [#allocation8], %s1429
          %1431 = dma.done %s1427, 512
        $region56: #{tpu_custom_call.1} parent=51 // pred_fallthru
          _
      $region52: #{tpu_custom_call.1} parent=5 // pred_fallthru
        _
    $region6: #{tpu_custom_call.1} parent=1 // loop_footer
      %s20 = sadd.s32 1, %s16
    $region7: #{tpu_custom_call.1} parent=1 // loop_footer_branch
      %15 = sbr.rel target = $region3
    $region8: #{tpu_custom_call.1} parent=1 // loop_exit
      _
    %1432 = vsyncpa [#allocation3], 1
    %s1433 = scalar_lea.sflag [#allocation3], 1
    %1434 = vsyncpa %s1433, 1
    %1435 = vsyncpa [#allocation6], 1
    %1436 = vsyncpa [#allocation4], 1
    %s1437 = scalar_lea.sflag [#allocation4], 1
    %1438 = vsyncpa %s1437, 1

</llo_original>
